<compile_context>
chip_gen: v5e
topology: v5e:2x2
jax: 0.10.0
libtpu: 0.0.40
codegen_flags: <defaults>
</compile_context>

<pallas_src>
import math

import jax
import jax.numpy as jnp
import numpy as np
from jax.experimental import pallas as pl
from jax.experimental.pallas import tpu as pltpu


# ----------------------------- in-kernel helpers -----------------------------

def _layernorm(x, w, b, eps=1e-5):
    mu = jnp.mean(x, axis=-1, keepdims=True)
    var = jnp.mean((x - mu) ** 2, axis=-1, keepdims=True)
    return (x - mu) * jax.lax.rsqrt(var + eps) * w + b


def _gelu_tanh(x):
    c = math.sqrt(2.0 / math.pi)
    return 0.5 * x * (1.0 + jnp.tanh(c * (x + 0.044715 * x * x * x)))


def _pick_tile(dim, pref, align):
    """Largest tile <= pref that equals dim or is an `align`-multiple dividing dim."""
    if dim <= pref:
        return dim
    t = (pref // align) * align
    while t >= align:
        if dim % t == 0:
            return t
        t -= align
    return dim  # ragged dim: fall back to full extent (fine at toy sizes)


# ----------------------- fused transformer blocks kernel ----------------------

def make_blocks_kernel(B, T, H, d, n_layer):
    E = H * d
    BT = B * T
    scale = 1.0 / math.sqrt(d)

    def kernel(x_ref, ln1w, ln1b, wq, wk, wv, bq, bk, bv, wo, bo,
               ln2w, ln2b, wfc, bfc, wproj, bproj, o_ref):
        layer = pl.program_id(0)

        # Residual stream lives in the (VMEM-resident) output block across the
        # whole layer grid; seed it from the input on the first layer.
        @pl.when(layer == 0)
        def _():
            o_ref[...] = x_ref[...]

        x = o_ref[...]                                        # [BT, E] f32

        # ---------------- attention branch ----------------
        h1 = _layernorm(x, ln1w[...], ln1b[...])
        h1b = h1.astype(jnp.bfloat16)

        # additive causal mask (shared by all heads): 0 where allowed, -1e30 else
        ri = jax.lax.broadcasted_iota(jnp.int32, (T, T), 0)
        ci = jax.lax.broadcasted_iota(jnp.int32, (T, T), 1)
        causal_bias = jnp.where(ri >= ci, 0.0, -1e30).astype(jnp.float32)

        attn = jnp.zeros((BT, E), jnp.float32)
        for h in range(H):  # static loop over heads; batch handled by batched einsum
            q = jnp.dot(h1b, wq[h], preferred_element_type=jnp.float32) + bq[h]
            k = jnp.dot(h1b, wk[h], preferred_element_type=jnp.float32) + bk[h]
            v = jnp.dot(h1b, wv[h], preferred_element_type=jnp.float32) + bv[h]
            q3 = q.reshape(B, T, d).astype(jnp.bfloat16)
            k3 = k.reshape(B, T, d).astype(jnp.bfloat16)
            v3 = v.reshape(B, T, d).astype(jnp.bfloat16)

            s = jnp.einsum('bqd,bkd->bqk', q3, k3,
                           preferred_element_type=jnp.float32) * scale
            s = s + causal_bias[None, :, :]
            m = jnp.max(s, axis=-1, keepdims=True)
            p = jnp.exp(s - m)
            denom = jnp.sum(p, axis=-1, keepdims=True)
            p = p * pl.reciprocal(denom, approx=True)

            a = jnp.einsum('bqk,bkd->bqd', p.astype(jnp.bfloat16), v3,
                           preferred_element_type=jnp.float32)   # (B, T, d)
            # per-head out-projection, accumulated in f32 (== concat @ Wo)
            attn = attn + jnp.dot(a.reshape(BT, d).astype(jnp.bfloat16), wo[h],
                                  preferred_element_type=jnp.float32)
        x = x + attn + bo[...]

        # ---------------- MLP branch ----------------
        h2 = _layernorm(x, ln2w[...], ln2b[...])
        f = jnp.dot(h2.astype(jnp.bfloat16), wfc[...],
                    preferred_element_type=jnp.float32) + bfc[...]
        g = _gelu_tanh(f)
        mlp = jnp.dot(g.astype(jnp.bfloat16), wproj[...],
                      preferred_element_type=jnp.float32) + bproj[...]

        o_ref[...] = x + mlp

    return kernel


def run_blocks(x_flat, s, B, T, H, d, n_layer):
    E = H * d
    BT = B * T
    idx3 = lambda l: (l, 0, 0)
    idx4 = lambda l: (l, 0, 0, 0)
    in_specs = [
        pl.BlockSpec((BT, E), lambda l: (0, 0)),          # x (read at layer 0)
        pl.BlockSpec((None, 1, E), idx3),                 # ln1 w
        pl.BlockSpec((None, 1, E), idx3),                 # ln1 b
        pl.BlockSpec((None, H, E, d), idx4),              # Wq  per head
        pl.BlockSpec((None, H, E, d), idx4),              # Wk
        pl.BlockSpec((None, H, E, d), idx4),              # Wv
        pl.BlockSpec((None, H, 1, d), idx4),              # bq
        pl.BlockSpec((None, H, 1, d), idx4),              # bk
        pl.BlockSpec((None, H, 1, d), idx4),              # bv
        pl.BlockSpec((None, H, d, E), idx4),              # Wo per head
        pl.BlockSpec((None, 1, E), idx3),                 # bo
        pl.BlockSpec((None, 1, E), idx3),                 # ln2 w
        pl.BlockSpec((None, 1, E), idx3),                 # ln2 b
        pl.BlockSpec((None, E, 4 * E), idx3),             # W fc
        pl.BlockSpec((None, 1, 4 * E), idx3),             # b fc
        pl.BlockSpec((None, 4 * E, E), idx3),             # W proj
        pl.BlockSpec((None, 1, E), idx3),                 # b proj
    ]
    args = (x_flat,
            s["ln1w"], s["ln1b"], s["wq"], s["wk"], s["wv"],
            s["bq"], s["bk"], s["bv"], s["wo"], s["bo"],
            s["ln2w"], s["ln2b"], s["wfc"], s["bfc"], s["wproj"], s["bproj"])
    return pl.pallas_call(
        make_blocks_kernel(B, T, H, d, n_layer),
        out_shape=jax.ShapeDtypeStruct((BT, E), jnp.float32),
        grid=(n_layer,),
        in_specs=in_specs,
        out_specs=pl.BlockSpec((BT, E), lambda l: (0, 0)),
        compiler_params=pltpu.CompilerParams(
            dimension_semantics=("arbitrary",),           # layers are sequential
            vmem_limit_bytes=48 * 1024 * 1024),
    )(*args)


# --------------------------- final LN + lm_head kernel ------------------------

def lnf_head_kernel(x_ref, lnw, lnb, wt_ref, o_ref):
    h = _layernorm(x_ref[...], lnw[...], lnb[...])
    o_ref[...] = jnp.dot(h.astype(jnp.bfloat16), wt_ref[...],
                         preferred_element_type=jnp.float32)


def run_head(x_flat, ln_w, ln_b, w_t_bf16):
    BT, E = x_flat.shape
    V = w_t_bf16.shape[1]
    tm = _pick_tile(BT, 256, 8)
    tn = _pick_tile(V, 512, 128)
    grid = (BT // tm, V // tn)
    return pl.pallas_call(
        lnf_head_kernel,
        out_shape=jax.ShapeDtypeStruct((BT, V), jnp.float32),
        grid=grid,
        in_specs=[
            pl.BlockSpec((tm, E), lambda i, j: (i, 0)),
            pl.BlockSpec((1, E), lambda i, j: (0, 0)),
            pl.BlockSpec((1, E), lambda i, j: (0, 0)),
            pl.BlockSpec((E, tn), lambda i, j: (0, j)),
        ],
        out_specs=pl.BlockSpec((tm, tn), lambda i, j: (i, j)),
        compiler_params=pltpu.CompilerParams(
            dimension_semantics=("parallel", "parallel"),
            vmem_limit_bytes=48 * 1024 * 1024),
    )(x_flat, ln_w, ln_b, w_t_bf16)


# ------------------------------- parameter init --------------------------------

def init_linear(key, fan_in, fan_out):
    k1, k2 = jax.random.split(key)
    bound = 1.0 / math.sqrt(fan_in)
    w = jax.random.uniform(k1, (fan_out, fan_in), jnp.float32, -bound, bound)
    b = jax.random.uniform(k2, (fan_out,), jnp.float32, -bound, bound)
    return w, b


def init_params(key, vocab_size, block_size, n_embed, n_layer):
    keys = jax.random.split(key, 3 + n_layer)
    params = {
        # tied: lm_head.weight = wte.weight  (shape [vocab, E])
        "wte": 0.02 * jax.random.normal(keys[0], (vocab_size, n_embed), jnp.float32),
        "wpe": 0.02 * jax.random.normal(keys[1], (block_size, n_embed), jnp.float32),
        "ln_f_w": jnp.ones((1, n_embed), jnp.float32),
        "ln_f_b": jnp.zeros((1, n_embed), jnp.float32),
        "blocks": [],
    }
    for li in range(n_layer):
        lk = jax.random.split(keys[3 + li], 4)
        qkv_w, qkv_b = init_linear(lk[0], n_embed, 3 * n_embed)
        out_w, out_b = init_linear(lk[1], n_embed, n_embed)
        fc_w, fc_b = init_linear(lk[2], n_embed, 4 * n_embed)
        pr_w, pr_b = init_linear(lk[3], 4 * n_embed, n_embed)
        params["blocks"].append({
            "ln1_w": jnp.ones((1, n_embed), jnp.float32),
            "ln1_b": jnp.zeros((1, n_embed), jnp.float32),
            "ln2_w": jnp.ones((1, n_embed), jnp.float32),
            "ln2_b": jnp.zeros((1, n_embed), jnp.float32),
            # pre-transpose torch [out,in] -> [in,out]; matmul weights in bf16
            "qkv_w_t": qkv_w.T.astype(jnp.bfloat16), "qkv_b": qkv_b.reshape(1, -1),
            "out_w_t": out_w.T.astype(jnp.bfloat16), "out_b": out_b.reshape(1, -1),
            "fc_w_t": fc_w.T.astype(jnp.bfloat16), "fc_b": fc_b.reshape(1, -1),
            "proj_w_t": pr_w.T.astype(jnp.bfloat16), "proj_b": pr_b.reshape(1, -1),
        })
    return params


def stack_block_params(blocks, H, d):
    """Stack per-layer weights along a leading layer axis and pre-split heads.

    Torch semantics: qkv.view(B,T,H,3d).chunk(3,-1) => output column layout is
    interleaved per head: [q_h | k_h | v_h] for each head h.  We split that
    interleaving here (wrapper side) so the kernel never slices misaligned
    lanes, and split out_proj's input rows per head so the kernel accumulates
    per-head out-projections instead of concatenating heads.
    """
    def cat(name):
        return jnp.stack([b[name] for b in blocks], axis=0)

    def qkv_split(w_t, off):     # [E, 3E] -> [H, E, d]   (off: 0=q, 1=k, 2=v)
        return jnp.stack(
            [w_t[:, h * 3 * d + off * d: h * 3 * d + (off + 1) * d]
             for h in range(H)], axis=0)

    def qkv_bias_split(b2, off):  # [1, 3E] -> [H, 1, d]
        return jnp.stack(
            [b2[:, h * 3 * d + off * d: h * 3 * d + (off + 1) * d]
             for h in range(H)], axis=0)

    def out_split(w_t):           # [E, E] -> [H, d, E]
        return jnp.stack([w_t[h * d:(h + 1) * d, :] for h in range(H)], axis=0)

    return dict(
        ln1w=cat("ln1_w"), ln1b=cat("ln1_b"),
        wq=jnp.stack([qkv_split(b["qkv_w_t"], 0) for b in blocks], 0),
        wk=jnp.stack([qkv_split(b["qkv_w_t"], 1) for b in blocks], 0),
        wv=jnp.stack([qkv_split(b["qkv_w_t"], 2) for b in blocks], 0),
        bq=jnp.stack([qkv_bias_split(b["qkv_b"], 0) for b in blocks], 0),
        bk=jnp.stack([qkv_bias_split(b["qkv_b"], 1) for b in blocks], 0),
        bv=jnp.stack([qkv_bias_split(b["qkv_b"], 2) for b in blocks], 0),
        wo=jnp.stack([out_split(b["out_w_t"]) for b in blocks], 0),
        bo=cat("out_b"),
        ln2w=cat("ln2_w"), ln2b=cat("ln2_b"),
        wfc=cat("fc_w_t"), bfc=cat("fc_b"),
        wproj=cat("proj_w_t"), bproj=cat("proj_b"),
    )


# --------------------------------- full forward --------------------------------

def gpt2_forward_pallas(ids, params, n_head):
    B, T = ids.shape
    V, E = params["wte"].shape
    d = E // n_head
    n_layer = len(params["blocks"])
    # Embedding gathers are JAX glue (data-dependent gather).
    tok_emb = params["wte"][ids]                # (B, T, E)
    pos_emb = params["wpe"][:T]                 # (T, E)
    x = (tok_emb + pos_emb[None, :, :]).reshape(B * T, E).astype(jnp.float32)

    stacked = stack_block_params(params["blocks"], n_head, d)
    x = run_blocks(x, stacked, B, T, n_head, d, n_layer)

    logits = run_head(x, params["ln_f_w"], params["ln_f_b"],
                      params["wte"].T.astype(jnp.bfloat16))
    return logits.reshape(B, T, V)


# ------------------------------ pure-JAX reference ------------------------------

def _ln_ref(x, w, b, eps=1e-5):
    mu = jnp.mean(x, axis=-1, keepdims=True)
    var = jnp.mean((x - mu) ** 2, axis=-1, keepdims=True)
    return (x - mu) / jnp.sqrt(var + eps) * w + b


def _dot_bf16(a, w):
    return jnp.dot(a.astype(jnp.bfloat16), w.astype(jnp.bfloat16),
                   preferred_element_type=jnp.float32)


def gpt2_forward_ref(ids, params, n_head):
    """Matches the torch module (interleaved qkv view/chunk layout), with the
    same bf16-matmul / f32-accumulate precision choice as the kernels."""
    B, T = ids.shape
    E = params["wte"].shape[1]
    d = E // n_head
    x = (params["wte"][ids] + params["wpe"][:T][None, :, :]).astype(jnp.float32)
    for lp in params["blocks"]:
        h1 = _ln_ref(x, lp["ln1_w"][0], lp["ln1_b"][0])
        qkv = _dot_bf16(h1, lp["qkv_w_t"]) + lp["qkv_b"][0]
        qkv = qkv.reshape(B, T, n_head, 3 * d)
        q, k, v = qkv[..., :d], qkv[..., d:2 * d], qkv[..., 2 * d:]
        q, k, v = [jnp.transpose(a, (0, 2, 1, 3)) for a in (q, k, v)]
        s = jnp.einsum("bhqd,bhkd->bhqk", q.astype(jnp.bfloat16),
                       k.astype(jnp.bfloat16),
                       preferred_element_type=jnp.float32) / math.sqrt(d)
        mask = jnp.tril(jnp.ones((T, T)))
        s = jnp.where(mask == 0, -jnp.inf, s)
        w = jax.nn.softmax(s, axis=-1)
        a = jnp.einsum("bhqk,bhkd->bhqd", w.astype(jnp.bfloat16),
                       v.astype(jnp.bfloat16),
                       preferred_element_type=jnp.float32)
        a = jnp.transpose(a, (0, 2, 1, 3)).reshape(B, T, E)
        x = x + (_dot_bf16(a, lp["out_w_t"]) + lp["out_b"][0])
        h2 = _ln_ref(x, lp["ln2_w"][0], lp["ln2_b"][0])
        f = _dot_bf16(h2, lp["fc_w_t"]) + lp["fc_b"][0]
        g = 0.5 * f * (1.0 + jnp.tanh(math.sqrt(2.0 / math.pi) *
                                      (f + 0.044715 * f ** 3)))
        x = x + (_dot_bf16(g, lp["proj_w_t"]) + lp["proj_b"][0])
    x = _ln_ref(x, params["ln_f_w"][0], params["ln_f_b"][0])
    return _dot_bf16(x, params["wte"].T)


# ------------------------------------ main --------------------------------------

if __name__ == "__main__":
    vocab_size, block_size = 64, 16
    n_embed, n_head, n_layer = 32, 4, 2
    B, T = 2, 8

    key = jax.random.PRNGKey(0)
    pkey, ikey = jax.random.split(key)
    params = init_params(pkey, vocab_size, block_size, n_embed, n_layer)
    ids = jax.random.randint(ikey, (B, T), 0, vocab_size, dtype=jnp.int32)

    logits = gpt2_forward_pallas(ids, params, n_head)
    logits = jax.block_until_ready(logits)
    assert logits.shape == (B, T, vocab_size)

    ref = jax.block_until_ready(gpt2_forward_ref(ids, params, n_head))
    np.testing.assert_allclose(np.asarray(logits), np.asarray(ref),
                               rtol=2e-2, atol=2e-2)

    print("KERNEL_OK")
</pallas_src>

<mosaic_0001>
module attributes {stable_mosaic.version = 11 : i64} {
  func.func @kernel(%arg0: i32, %arg1: memref<16x32xf32, #tpu.memory_space<vmem>>, %arg2: memref<1x1x32xf32, #tpu.memory_space<vmem>>, %arg3: memref<1x1x32xf32, #tpu.memory_space<vmem>>, %arg4: memref<1x4x32x8xbf16, #tpu.memory_space<vmem>>, %arg5: memref<1x4x32x8xbf16, #tpu.memory_space<vmem>>, %arg6: memref<1x4x32x8xbf16, #tpu.memory_space<vmem>>, %arg7: memref<1x4x1x8xf32, #tpu.memory_space<vmem>>, %arg8: memref<1x4x1x8xf32, #tpu.memory_space<vmem>>, %arg9: memref<1x4x1x8xf32, #tpu.memory_space<vmem>>, %arg10: memref<1x4x8x32xbf16, #tpu.memory_space<vmem>>, %arg11: memref<1x1x32xf32, #tpu.memory_space<vmem>>, %arg12: memref<1x1x32xf32, #tpu.memory_space<vmem>>, %arg13: memref<1x1x32xf32, #tpu.memory_space<vmem>>, %arg14: memref<1x32x128xbf16, #tpu.memory_space<vmem>>, %arg15: memref<1x1x128xf32, #tpu.memory_space<vmem>>, %arg16: memref<1x128x32xbf16, #tpu.memory_space<vmem>>, %arg17: memref<1x1x32xf32, #tpu.memory_space<vmem>>, %arg18: memref<16x32xf32, #tpu.memory_space<vmem>>) attributes {dimension_semantics = [#tpu.dimension_semantics<arbitrary>], iteration_bounds = array<i64: 2>, scalar_prefetch = 0 : i64, scratch_operands = 0 : i64, tpu.core_type = #tpu.core_type<tc>, window_params = [{pipeline_mode = #tpu.pipeline_mode<synchronous>, transform_indices = @transform_0, window_bounds = array<i64: 16, 32>}, {transform_indices = @transform_1, window_bounds = array<i64: 1, 1, 32>}, {transform_indices = @transform_2, window_bounds = array<i64: 1, 1, 32>}, {transform_indices = @transform_3, window_bounds = array<i64: 1, 4, 32, 8>}, {transform_indices = @transform_4, window_bounds = array<i64: 1, 4, 32, 8>}, {transform_indices = @transform_5, window_bounds = array<i64: 1, 4, 32, 8>}, {transform_indices = @transform_6, window_bounds = array<i64: 1, 4, 1, 8>}, {transform_indices = @transform_7, window_bounds = array<i64: 1, 4, 1, 8>}, {transform_indices = @transform_8, window_bounds = array<i64: 1, 4, 1, 8>}, {transform_indices = @transform_9, window_bounds = array<i64: 1, 4, 8, 32>}, {transform_indices = @transform_10, window_bounds = array<i64: 1, 1, 32>}, {transform_indices = @transform_11, window_bounds = array<i64: 1, 1, 32>}, {transform_indices = @transform_12, window_bounds = array<i64: 1, 1, 32>}, {transform_indices = @transform_13, window_bounds = array<i64: 1, 32, 128>}, {transform_indices = @transform_14, window_bounds = array<i64: 1, 1, 128>}, {transform_indices = @transform_15, window_bounds = array<i64: 1, 128, 32>}, {transform_indices = @transform_16, window_bounds = array<i64: 1, 1, 32>}, {pipeline_mode = #tpu.pipeline_mode<synchronous>, transform_indices = @transform_17, window_bounds = array<i64: 16, 32>}]} {
    %c0_i32 = arith.constant 0 : i32
    %0 = arith.cmpi eq, %arg0, %c0_i32 : i32
    %1 = arith.extui %0 : i1 to i32
    %c0_i32_0 = arith.constant 0 : i32
    %2 = arith.cmpi ne, %1, %c0_i32_0 : i32
    scf.if %2 {
      %c0_194 = arith.constant 0 : index
      %c0_195 = arith.constant 0 : index
      %304 = vector.load %arg1[%c0_194, %c0_195] : memref<16x32xf32, #tpu.memory_space<vmem>>, vector<16x32xf32>
      %c0_196 = arith.constant 0 : index
      %c0_197 = arith.constant 0 : index
      %305 = vector.load %arg18[%c0_196, %c0_197] : memref<16x32xf32, #tpu.memory_space<vmem>>, vector<16x32xf32>
      tpu.vector_store %arg18[%c0_196, %c0_197], %304 {strides = array<i32>} : memref<16x32xf32, #tpu.memory_space<vmem>>, vector<16x32xf32>,
    } else {
    }
    %c0 = arith.constant 0 : index
    %c0_1 = arith.constant 0 : index
    %3 = vector.load %arg18[%c0, %c0_1] : memref<16x32xf32, #tpu.memory_space<vmem>>, vector<16x32xf32>
    %c0_2 = arith.constant 0 : index
    %c0_3 = arith.constant 0 : index
    %c0_4 = arith.constant 0 : index
    %4 = vector.load %arg2[%c0_2, %c0_3, %c0_4] : memref<1x1x32xf32, #tpu.memory_space<vmem>>, vector<1x1x32xf32>
    %5 = vector.shape_cast %4 : vector<1x1x32xf32> to vector<1x32xf32>
    %c0_5 = arith.constant 0 : index
    %c0_6 = arith.constant 0 : index
    %c0_7 = arith.constant 0 : index
    %6 = vector.load %arg3[%c0_5, %c0_6, %c0_7] : memref<1x1x32xf32, #tpu.memory_space<vmem>>, vector<1x1x32xf32>
    %7 = vector.shape_cast %6 : vector<1x1x32xf32> to vector<1x32xf32>
    %cst = arith.constant dense<0.000000e+00> : vector<16xf32>
    %8 = vector.multi_reduction <add>, %3, %cst [1] : vector<16x32xf32> to vector<16xf32>
    %9 = vector.shape_cast %8 : vector<16xf32> to vector<16x1xf32>
    %cst_8 = arith.constant 3.200000e+01 : f32
    %10 = vector.broadcast %cst_8 : f32 to vector<16x1xf32>
    %11 = arith.divf %9, %10 : vector<16x1xf32>
    %12 = vector.broadcast %11 : vector<16x1xf32> to vector<16x32xf32>
    %13 = arith.subf %3, %12 : vector<16x32xf32>
    %14 = arith.mulf %13, %13 : vector<16x32xf32>
    %cst_9 = arith.constant dense<0.000000e+00> : vector<16xf32>
    %15 = vector.multi_reduction <add>, %14, %cst_9 [1] : vector<16x32xf32> to vector<16xf32>
    %16 = vector.shape_cast %15 : vector<16xf32> to vector<16x1xf32>
    %cst_10 = arith.constant 3.200000e+01 : f32
    %17 = vector.broadcast %cst_10 : f32 to vector<16x1xf32>
    %18 = arith.divf %16, %17 : vector<16x1xf32>
    %19 = vector.broadcast %11 : vector<16x1xf32> to vector<16x32xf32>
    %20 = arith.subf %3, %19 : vector<16x32xf32>
    %cst_11 = arith.constant 9.99999974E-6 : f32
    %21 = vector.broadcast %cst_11 : f32 to vector<16x1xf32>
    %22 = arith.addf %18, %21 : vector<16x1xf32>
    %23 = math.rsqrt %22 : vector<16x1xf32>
    %24 = vector.broadcast %23 : vector<16x1xf32> to vector<16x32xf32>
    %25 = arith.mulf %20, %24 : vector<16x32xf32>
    %26 = vector.broadcast %5 : vector<1x32xf32> to vector<16x32xf32>
    %27 = arith.mulf %25, %26 : vector<16x32xf32>
    %28 = vector.broadcast %7 : vector<1x32xf32> to vector<16x32xf32>
    %29 = arith.addf %27, %28 : vector<16x32xf32>
    %30 = arith.truncf %29 : vector<16x32xf32> to vector<16x32xbf16>
    %31 = tpu.iota {dimensions = array<i32: 0>} : vector<8x8xi32>
    %32 = tpu.iota {dimensions = array<i32: 1>} : vector<8x8xi32>
    %33 = arith.cmpi sge, %31, %32 : vector<8x8xi32>
    %cst_12 = arith.constant 0.000000e+00 : f32
    %cst_13 = arith.constant -1.000000e+30 : f32
    %34 = vector.broadcast %cst_12 : f32 to vector<8x8xf32>
    %35 = vector.broadcast %cst_13 : f32 to vector<8x8xf32>
    %36 = arith.select %33, %34, %35 : vector<8x8xi1>, vector<8x8xf32>
    %cst_14 = arith.constant 0.000000e+00 : f32
    %37 = vector.broadcast %cst_14 : f32 to vector<16x32xf32>
    %c0_15 = arith.constant 0 : index
    %c0_16 = arith.constant 0 : index
    %c0_17 = arith.constant 0 : index
    %c0_18 = arith.constant 0 : index
    %38 = vector.load %arg4[%c0_15, %c0_16, %c0_17, %c0_18] : memref<1x4x32x8xbf16, #tpu.memory_space<vmem>>, vector<1x1x32x8xbf16>
    %39 = vector.shape_cast %38 : vector<1x1x32x8xbf16> to vector<32x8xbf16>
    %cst_19 = arith.constant dense<0.000000e+00> : vector<16x8xf32>
    %40 = tpu.matmul %30, %39, %cst_19 {dimension_numbers = #tpu.dot_dimension_numbers<[1], [0], [0], [1], [0, 0, 1, 1], [], []>} : vector<16x32xbf16>, vector<32x8xbf16>, vector<16x8xf32> -> vector<16x8xf32>
    %c0_20 = arith.constant 0 : index
    %c0_21 = arith.constant 0 : index
    %c0_22 = arith.constant 0 : index
    %c0_23 = arith.constant 0 : index
    %41 = vector.load %arg7[%c0_20, %c0_21, %c0_22, %c0_23] : memref<1x4x1x8xf32, #tpu.memory_space<vmem>>, vector<1x1x1x8xf32>
    %42 = vector.shape_cast %41 : vector<1x1x1x8xf32> to vector<1x8xf32>
    %43 = vector.broadcast %42 : vector<1x8xf32> to vector<16x8xf32>
    %44 = arith.addf %40, %43 : vector<16x8xf32>
    %c0_24 = arith.constant 0 : index
    %c0_25 = arith.constant 0 : index
    %c0_26 = arith.constant 0 : index
    %c0_27 = arith.constant 0 : index
    %45 = vector.load %arg5[%c0_24, %c0_25, %c0_26, %c0_27] : memref<1x4x32x8xbf16, #tpu.memory_space<vmem>>, vector<1x1x32x8xbf16>
    %46 = vector.shape_cast %45 : vector<1x1x32x8xbf16> to vector<32x8xbf16>
    %cst_28 = arith.constant dense<0.000000e+00> : vector<16x8xf32>
    %47 = tpu.matmul %30, %46, %cst_28 {dimension_numbers = #tpu.dot_dimension_numbers<[1], [0], [0], [1], [0, 0, 1, 1], [], []>} : vector<16x32xbf16>, vector<32x8xbf16>, vector<16x8xf32> -> vector<16x8xf32>
    %c0_29 = arith.constant 0 : index
    %c0_30 = arith.constant 0 : index
    %c0_31 = arith.constant 0 : index
    %c0_32 = arith.constant 0 : index
    %48 = vector.load %arg8[%c0_29, %c0_30, %c0_31, %c0_32] : memref<1x4x1x8xf32, #tpu.memory_space<vmem>>, vector<1x1x1x8xf32>
    %49 = vector.shape_cast %48 : vector<1x1x1x8xf32> to vector<1x8xf32>
    %50 = vector.broadcast %49 : vector<1x8xf32> to vector<16x8xf32>
    %51 = arith.addf %47, %50 : vector<16x8xf32>
    %c0_33 = arith.constant 0 : index
    %c0_34 = arith.constant 0 : index
    %c0_35 = arith.constant 0 : index
    %c0_36 = arith.constant 0 : index
    %52 = vector.load %arg6[%c0_33, %c0_34, %c0_35, %c0_36] : memref<1x4x32x8xbf16, #tpu.memory_space<vmem>>, vector<1x1x32x8xbf16>
    %53 = vector.shape_cast %52 : vector<1x1x32x8xbf16> to vector<32x8xbf16>
    %cst_37 = arith.constant dense<0.000000e+00> : vector<16x8xf32>
    %54 = tpu.matmul %30, %53, %cst_37 {dimension_numbers = #tpu.dot_dimension_numbers<[1], [0], [0], [1], [0, 0, 1, 1], [], []>} : vector<16x32xbf16>, vector<32x8xbf16>, vector<16x8xf32> -> vector<16x8xf32>
    %c0_38 = arith.constant 0 : index
    %c0_39 = arith.constant 0 : index
    %c0_40 = arith.constant 0 : index
    %c0_41 = arith.constant 0 : index
    %55 = vector.load %arg9[%c0_38, %c0_39, %c0_40, %c0_41] : memref<1x4x1x8xf32, #tpu.memory_space<vmem>>, vector<1x1x1x8xf32>
    %56 = vector.shape_cast %55 : vector<1x1x1x8xf32> to vector<1x8xf32>
    %57 = vector.broadcast %56 : vector<1x8xf32> to vector<16x8xf32>
    %58 = arith.addf %54, %57 : vector<16x8xf32>
    %59 = vector.shape_cast %44 : vector<16x8xf32> to vector<2x8x8xf32>
    %60 = arith.truncf %59 : vector<2x8x8xf32> to vector<2x8x8xbf16>
    %61 = vector.shape_cast %51 : vector<16x8xf32> to vector<2x8x8xf32>
    %62 = arith.truncf %61 : vector<2x8x8xf32> to vector<2x8x8xbf16>
    %63 = vector.shape_cast %58 : vector<16x8xf32> to vector<2x8x8xf32>
    %64 = arith.truncf %63 : vector<2x8x8xf32> to vector<2x8x8xbf16>
    "tpu.trace_start"() <{level = 10 : i32, message = "bqd,bkd->bqk"}> : () -> ()
    %cst_42 = arith.constant dense<0.000000e+00> : vector<2x8x8xf32>
    %65 = tpu.matmul %60, %62, %cst_42 {dimension_numbers = #tpu.dot_dimension_numbers<[2], [2], [1], [1], [0, 0, 0, 1, 1, 1], [0], [0]>} : vector<2x8x8xbf16>, vector<2x8x8xbf16>, vector<2x8x8xf32> -> vector<2x8x8xf32>
    "tpu.trace_stop"() : () -> ()
    %cst_43 = arith.constant 0.353553385 : f32
    %66 = vector.broadcast %cst_43 : f32 to vector<2x8x8xf32>
    %67 = arith.mulf %65, %66 : vector<2x8x8xf32>
    %68 = vector.shape_cast %36 : vector<8x8xf32> to vector<1x8x8xf32>
    %69 = vector.broadcast %68 : vector<1x8x8xf32> to vector<2x8x8xf32>
    %70 = arith.addf %67, %69 : vector<2x8x8xf32>
    %cst_44 = arith.constant dense<0xFF800000> : vector<2x8xf32>
    %71 = vector.multi_reduction <maximumf>, %70, %cst_44 [2] : vector<2x8x8xf32> to vector<2x8xf32>
    %72 = vector.shape_cast %71 : vector<2x8xf32> to vector<2x8x1xf32>
    %73 = vector.broadcast %72 : vector<2x8x1xf32> to vector<2x8x8xf32>
    %74 = arith.subf %70, %73 : vector<2x8x8xf32>
    %75 = math.exp %74 : vector<2x8x8xf32>
    %cst_45 = arith.constant dense<0.000000e+00> : vector<2x8xf32>
    %76 = vector.multi_reduction <add>, %75, %cst_45 [2] : vector<2x8x8xf32> to vector<2x8xf32>
    %77 = vector.shape_cast %76 : vector<2x8xf32> to vector<2x8x1xf32>
    %78 = tpu.reciprocal %77 {approx = true} : vector<2x8x1xf32> -> vector<2x8x1xf32>
    %79 = vector.broadcast %78 : vector<2x8x1xf32> to vector<2x8x8xf32>
    %80 = arith.mulf %75, %79 : vector<2x8x8xf32>
    %81 = arith.truncf %80 : vector<2x8x8xf32> to vector<2x8x8xbf16>
    "tpu.trace_start"() <{level = 10 : i32, message = "bqk,bkd->bqd"}> : () -> ()
    %cst_46 = arith.constant dense<0.000000e+00> : vector<2x8x8xf32>
    %82 = tpu.matmul %81, %64, %cst_46 {dimension_numbers = #tpu.dot_dimension_numbers<[2], [1], [1], [2], [0, 0, 0, 1, 1, 2], [0], [0]>} : vector<2x8x8xbf16>, vector<2x8x8xbf16>, vector<2x8x8xf32> -> vector<2x8x8xf32>
    "tpu.trace_stop"() : () -> ()
    %83 = vector.shape_cast %82 : vector<2x8x8xf32> to vector<16x8xf32>
    %84 = arith.truncf %83 : vector<16x8xf32> to vector<16x8xbf16>
    %c0_47 = arith.constant 0 : index
    %c0_48 = arith.constant 0 : index
    %c0_49 = arith.constant 0 : index
    %c0_50 = arith.constant 0 : index
    %85 = vector.load %arg10[%c0_47, %c0_48, %c0_49, %c0_50] : memref<1x4x8x32xbf16, #tpu.memory_space<vmem>>, vector<1x1x8x32xbf16>
    %86 = vector.shape_cast %85 : vector<1x1x8x32xbf16> to vector<8x32xbf16>
    %cst_51 = arith.constant dense<0.000000e+00> : vector<16x32xf32>
    %87 = tpu.matmul %84, %86, %cst_51 {dimension_numbers = #tpu.dot_dimension_numbers<[1], [0], [0], [1], [0, 0, 1, 1], [], []>} : vector<16x8xbf16>, vector<8x32xbf16>, vector<16x32xf32> -> vector<16x32xf32>
    %88 = arith.addf %37, %87 : vector<16x32xf32>
    %c0_52 = arith.constant 0 : index
    %c1 = arith.constant 1 : index
    %c0_53 = arith.constant 0 : index
    %c0_54 = arith.constant 0 : index
    %89 = vector.load %arg4[%c0_52, %c1, %c0_53, %c0_54] : memref<1x4x32x8xbf16, #tpu.memory_space<vmem>>, vector<1x1x32x8xbf16>
    %90 = vector.shape_cast %89 : vector<1x1x32x8xbf16> to vector<32x8xbf16>
    %cst_55 = arith.constant dense<0.000000e+00> : vector<16x8xf32>
    %91 = tpu.matmul %30, %90, %cst_55 {dimension_numbers = #tpu.dot_dimension_numbers<[1], [0], [0], [1], [0, 0, 1, 1], [], []>} : vector<16x32xbf16>, vector<32x8xbf16>, vector<16x8xf32> -> vector<16x8xf32>
    %c0_56 = arith.constant 0 : index
    %c1_57 = arith.constant 1 : index
    %c0_58 = arith.constant 0 : index
    %c0_59 = arith.constant 0 : index
    %92 = vector.load %arg7[%c0_56, %c1_57, %c0_58, %c0_59] : memref<1x4x1x8xf32, #tpu.memory_space<vmem>>, vector<1x1x1x8xf32>
    %93 = vector.shape_cast %92 : vector<1x1x1x8xf32> to vector<1x8xf32>
    %94 = vector.broadcast %93 : vector<1x8xf32> to vector<16x8xf32>
    %95 = arith.addf %91, %94 : vector<16x8xf32>
    %c0_60 = arith.constant 0 : index
    %c1_61 = arith.constant 1 : index
    %c0_62 = arith.constant 0 : index
    %c0_63 = arith.constant 0 : index
    %96 = vector.load %arg5[%c0_60, %c1_61, %c0_62, %c0_63] : memref<1x4x32x8xbf16, #tpu.memory_space<vmem>>, vector<1x1x32x8xbf16>
    %97 = vector.shape_cast %96 : vector<1x1x32x8xbf16> to vector<32x8xbf16>
    %cst_64 = arith.constant dense<0.000000e+00> : vector<16x8xf32>
    %98 = tpu.matmul %30, %97, %cst_64 {dimension_numbers = #tpu.dot_dimension_numbers<[1], [0], [0], [1], [0, 0, 1, 1], [], []>} : vector<16x32xbf16>, vector<32x8xbf16>, vector<16x8xf32> -> vector<16x8xf32>
    %c0_65 = arith.constant 0 : index
    %c1_66 = arith.constant 1 : index
    %c0_67 = arith.constant 0 : index
    %c0_68 = arith.constant 0 : index
    %99 = vector.load %arg8[%c0_65, %c1_66, %c0_67, %c0_68] : memref<1x4x1x8xf32, #tpu.memory_space<vmem>>, vector<1x1x1x8xf32>
    %100 = vector.shape_cast %99 : vector<1x1x1x8xf32> to vector<1x8xf32>
    %101 = vector.broadcast %100 : vector<1x8xf32> to vector<16x8xf32>
    %102 = arith.addf %98, %101 : vector<16x8xf32>
    %c0_69 = arith.constant 0 : index
    %c1_70 = arith.constant 1 : index
    %c0_71 = arith.constant 0 : index
    %c0_72 = arith.constant 0 : index
    %103 = vector.load %arg6[%c0_69, %c1_70, %c0_71, %c0_72] : memref<1x4x32x8xbf16, #tpu.memory_space<vmem>>, vector<1x1x32x8xbf16>
    %104 = vector.shape_cast %103 : vector<1x1x32x8xbf16> to vector<32x8xbf16>
    %cst_73 = arith.constant dense<0.000000e+00> : vector<16x8xf32>
    %105 = tpu.matmul %30, %104, %cst_73 {dimension_numbers = #tpu.dot_dimension_numbers<[1], [0], [0], [1], [0, 0, 1, 1], [], []>} : vector<16x32xbf16>, vector<32x8xbf16>, vector<16x8xf32> -> vector<16x8xf32>
    %c0_74 = arith.constant 0 : index
    %c1_75 = arith.constant 1 : index
    %c0_76 = arith.constant 0 : index
    %c0_77 = arith.constant 0 : index
    %106 = vector.load %arg9[%c0_74, %c1_75, %c0_76, %c0_77] : memref<1x4x1x8xf32, #tpu.memory_space<vmem>>, vector<1x1x1x8xf32>
    %107 = vector.shape_cast %106 : vector<1x1x1x8xf32> to vector<1x8xf32>
    %108 = vector.broadcast %107 : vector<1x8xf32> to vector<16x8xf32>
    %109 = arith.addf %105, %108 : vector<16x8xf32>
    %110 = vector.shape_cast %95 : vector<16x8xf32> to vector<2x8x8xf32>
    %111 = arith.truncf %110 : vector<2x8x8xf32> to vector<2x8x8xbf16>
    %112 = vector.shape_cast %102 : vector<16x8xf32> to vector<2x8x8xf32>
    %113 = arith.truncf %112 : vector<2x8x8xf32> to vector<2x8x8xbf16>
    %114 = vector.shape_cast %109 : vector<16x8xf32> to vector<2x8x8xf32>
    %115 = arith.truncf %114 : vector<2x8x8xf32> to vector<2x8x8xbf16>
    "tpu.trace_start"() <{level = 10 : i32, message = "bqd,bkd->bqk"}> : () -> ()
    %cst_78 = arith.constant dense<0.000000e+00> : vector<2x8x8xf32>
    %116 = tpu.matmul %111, %113, %cst_78 {dimension_numbers = #tpu.dot_dimension_numbers<[2], [2], [1], [1], [0, 0, 0, 1, 1, 1], [0], [0]>} : vector<2x8x8xbf16>, vector<2x8x8xbf16>, vector<2x8x8xf32> -> vector<2x8x8xf32>
    "tpu.trace_stop"() : () -> ()
    %cst_79 = arith.constant 0.353553385 : f32
    %117 = vector.broadcast %cst_79 : f32 to vector<2x8x8xf32>
    %118 = arith.mulf %116, %117 : vector<2x8x8xf32>
    %119 = vector.shape_cast %36 : vector<8x8xf32> to vector<1x8x8xf32>
    %120 = vector.broadcast %119 : vector<1x8x8xf32> to vector<2x8x8xf32>
    %121 = arith.addf %118, %120 : vector<2x8x8xf32>
    %cst_80 = arith.constant dense<0xFF800000> : vector<2x8xf32>
    %122 = vector.multi_reduction <maximumf>, %121, %cst_80 [2] : vector<2x8x8xf32> to vector<2x8xf32>
    %123 = vector.shape_cast %122 : vector<2x8xf32> to vector<2x8x1xf32>
    %124 = vector.broadcast %123 : vector<2x8x1xf32> to vector<2x8x8xf32>
    %125 = arith.subf %121, %124 : vector<2x8x8xf32>
    %126 = math.exp %125 : vector<2x8x8xf32>
    %cst_81 = arith.constant dense<0.000000e+00> : vector<2x8xf32>
    %127 = vector.multi_reduction <add>, %126, %cst_81 [2] : vector<2x8x8xf32> to vector<2x8xf32>
    %128 = vector.shape_cast %127 : vector<2x8xf32> to vector<2x8x1xf32>
    %129 = tpu.reciprocal %128 {approx = true} : vector<2x8x1xf32> -> vector<2x8x1xf32>
    %130 = vector.broadcast %129 : vector<2x8x1xf32> to vector<2x8x8xf32>
    %131 = arith.mulf %126, %130 : vector<2x8x8xf32>
    %132 = arith.truncf %131 : vector<2x8x8xf32> to vector<2x8x8xbf16>
    "tpu.trace_start"() <{level = 10 : i32, message = "bqk,bkd->bqd"}> : () -> ()
    %cst_82 = arith.constant dense<0.000000e+00> : vector<2x8x8xf32>
    %133 = tpu.matmul %132, %115, %cst_82 {dimension_numbers = #tpu.dot_dimension_numbers<[2], [1], [1], [2], [0, 0, 0, 1, 1, 2], [0], [0]>} : vector<2x8x8xbf16>, vector<2x8x8xbf16>, vector<2x8x8xf32> -> vector<2x8x8xf32>
    "tpu.trace_stop"() : () -> ()
    %134 = vector.shape_cast %133 : vector<2x8x8xf32> to vector<16x8xf32>
    %135 = arith.truncf %134 : vector<16x8xf32> to vector<16x8xbf16>
    %c0_83 = arith.constant 0 : index
    %c1_84 = arith.constant 1 : index
    %c0_85 = arith.constant 0 : index
    %c0_86 = arith.constant 0 : index
    %136 = vector.load %arg10[%c0_83, %c1_84, %c0_85, %c0_86] : memref<1x4x8x32xbf16, #tpu.memory_space<vmem>>, vector<1x1x8x32xbf16>
    %137 = vector.shape_cast %136 : vector<1x1x8x32xbf16> to vector<8x32xbf16>
    %cst_87 = arith.constant dense<0.000000e+00> : vector<16x32xf32>
    %138 = tpu.matmul %135, %137, %cst_87 {dimension_numbers = #tpu.dot_dimension_numbers<[1], [0], [0], [1], [0, 0, 1, 1], [], []>} : vector<16x8xbf16>, vector<8x32xbf16>, vector<16x32xf32> -> vector<16x32xf32>
    %139 = arith.addf %88, %138 : vector<16x32xf32>
    %c0_88 = arith.constant 0 : index
    %c2 = arith.constant 2 : index
    %c0_89 = arith.constant 0 : index
    %c0_90 = arith.constant 0 : index
    %140 = vector.load %arg4[%c0_88, %c2, %c0_89, %c0_90] : memref<1x4x32x8xbf16, #tpu.memory_space<vmem>>, vector<1x1x32x8xbf16>
    %141 = vector.shape_cast %140 : vector<1x1x32x8xbf16> to vector<32x8xbf16>
    %cst_91 = arith.constant dense<0.000000e+00> : vector<16x8xf32>
    %142 = tpu.matmul %30, %141, %cst_91 {dimension_numbers = #tpu.dot_dimension_numbers<[1], [0], [0], [1], [0, 0, 1, 1], [], []>} : vector<16x32xbf16>, vector<32x8xbf16>, vector<16x8xf32> -> vector<16x8xf32>
    %c0_92 = arith.constant 0 : index
    %c2_93 = arith.constant 2 : index
    %c0_94 = arith.constant 0 : index
    %c0_95 = arith.constant 0 : index
    %143 = vector.load %arg7[%c0_92, %c2_93, %c0_94, %c0_95] : memref<1x4x1x8xf32, #tpu.memory_space<vmem>>, vector<1x1x1x8xf32>
    %144 = vector.shape_cast %143 : vector<1x1x1x8xf32> to vector<1x8xf32>
    %145 = vector.broadcast %144 : vector<1x8xf32> to vector<16x8xf32>
    %146 = arith.addf %142, %145 : vector<16x8xf32>
    %c0_96 = arith.constant 0 : index
    %c2_97 = arith.constant 2 : index
    %c0_98 = arith.constant 0 : index
    %c0_99 = arith.constant 0 : index
    %147 = vector.load %arg5[%c0_96, %c2_97, %c0_98, %c0_99] : memref<1x4x32x8xbf16, #tpu.memory_space<vmem>>, vector<1x1x32x8xbf16>
    %148 = vector.shape_cast %147 : vector<1x1x32x8xbf16> to vector<32x8xbf16>
    %cst_100 = arith.constant dense<0.000000e+00> : vector<16x8xf32>
    %149 = tpu.matmul %30, %148, %cst_100 {dimension_numbers = #tpu.dot_dimension_numbers<[1], [0], [0], [1], [0, 0, 1, 1], [], []>} : vector<16x32xbf16>, vector<32x8xbf16>, vector<16x8xf32> -> vector<16x8xf32>
    %c0_101 = arith.constant 0 : index
    %c2_102 = arith.constant 2 : index
    %c0_103 = arith.constant 0 : index
    %c0_104 = arith.constant 0 : index
    %150 = vector.load %arg8[%c0_101, %c2_102, %c0_103, %c0_104] : memref<1x4x1x8xf32, #tpu.memory_space<vmem>>, vector<1x1x1x8xf32>
    %151 = vector.shape_cast %150 : vector<1x1x1x8xf32> to vector<1x8xf32>
    %152 = vector.broadcast %151 : vector<1x8xf32> to vector<16x8xf32>
    %153 = arith.addf %149, %152 : vector<16x8xf32>
    %c0_105 = arith.constant 0 : index
    %c2_106 = arith.constant 2 : index
    %c0_107 = arith.constant 0 : index
    %c0_108 = arith.constant 0 : index
    %154 = vector.load %arg6[%c0_105, %c2_106, %c0_107, %c0_108] : memref<1x4x32x8xbf16, #tpu.memory_space<vmem>>, vector<1x1x32x8xbf16>
    %155 = vector.shape_cast %154 : vector<1x1x32x8xbf16> to vector<32x8xbf16>
    %cst_109 = arith.constant dense<0.000000e+00> : vector<16x8xf32>
    %156 = tpu.matmul %30, %155, %cst_109 {dimension_numbers = #tpu.dot_dimension_numbers<[1], [0], [0], [1], [0, 0, 1, 1], [], []>} : vector<16x32xbf16>, vector<32x8xbf16>, vector<16x8xf32> -> vector<16x8xf32>
    %c0_110 = arith.constant 0 : index
    %c2_111 = arith.constant 2 : index
    %c0_112 = arith.constant 0 : index
    %c0_113 = arith.constant 0 : index
    %157 = vector.load %arg9[%c0_110, %c2_111, %c0_112, %c0_113] : memref<1x4x1x8xf32, #tpu.memory_space<vmem>>, vector<1x1x1x8xf32>
    %158 = vector.shape_cast %157 : vector<1x1x1x8xf32> to vector<1x8xf32>
    %159 = vector.broadcast %158 : vector<1x8xf32> to vector<16x8xf32>
    %160 = arith.addf %156, %159 : vector<16x8xf32>
    %161 = vector.shape_cast %146 : vector<16x8xf32> to vector<2x8x8xf32>
    %162 = arith.truncf %161 : vector<2x8x8xf32> to vector<2x8x8xbf16>
    %163 = vector.shape_cast %153 : vector<16x8xf32> to vector<2x8x8xf32>
    %164 = arith.truncf %163 : vector<2x8x8xf32> to vector<2x8x8xbf16>
    %165 = vector.shape_cast %160 : vector<16x8xf32> to vector<2x8x8xf32>
    %166 = arith.truncf %165 : vector<2x8x8xf32> to vector<2x8x8xbf16>
    "tpu.trace_start"() <{level = 10 : i32, message = "bqd,bkd->bqk"}> : () -> ()
    %cst_114 = arith.constant dense<0.000000e+00> : vector<2x8x8xf32>
    %167 = tpu.matmul %162, %164, %cst_114 {dimension_numbers = #tpu.dot_dimension_numbers<[2], [2], [1], [1], [0, 0, 0, 1, 1, 1], [0], [0]>} : vector<2x8x8xbf16>, vector<2x8x8xbf16>, vector<2x8x8xf32> -> vector<2x8x8xf32>
    "tpu.trace_stop"() : () -> ()
    %cst_115 = arith.constant 0.353553385 : f32
    %168 = vector.broadcast %cst_115 : f32 to vector<2x8x8xf32>
    %169 = arith.mulf %167, %168 : vector<2x8x8xf32>
    %170 = vector.shape_cast %36 : vector<8x8xf32> to vector<1x8x8xf32>
    %171 = vector.broadcast %170 : vector<1x8x8xf32> to vector<2x8x8xf32>
    %172 = arith.addf %169, %171 : vector<2x8x8xf32>
    %cst_116 = arith.constant dense<0xFF800000> : vector<2x8xf32>
    %173 = vector.multi_reduction <maximumf>, %172, %cst_116 [2] : vector<2x8x8xf32> to vector<2x8xf32>
    %174 = vector.shape_cast %173 : vector<2x8xf32> to vector<2x8x1xf32>
    %175 = vector.broadcast %174 : vector<2x8x1xf32> to vector<2x8x8xf32>
    %176 = arith.subf %172, %175 : vector<2x8x8xf32>
    %177 = math.exp %176 : vector<2x8x8xf32>
    %cst_117 = arith.constant dense<0.000000e+00> : vector<2x8xf32>
    %178 = vector.multi_reduction <add>, %177, %cst_117 [2] : vector<2x8x8xf32> to vector<2x8xf32>
    %179 = vector.shape_cast %178 : vector<2x8xf32> to vector<2x8x1xf32>
    %180 = tpu.reciprocal %179 {approx = true} : vector<2x8x1xf32> -> vector<2x8x1xf32>
    %181 = vector.broadcast %180 : vector<2x8x1xf32> to vector<2x8x8xf32>
    %182 = arith.mulf %177, %181 : vector<2x8x8xf32>
    %183 = arith.truncf %182 : vector<2x8x8xf32> to vector<2x8x8xbf16>
    "tpu.trace_start"() <{level = 10 : i32, message = "bqk,bkd->bqd"}> : () -> ()
    %cst_118 = arith.constant dense<0.000000e+00> : vector<2x8x8xf32>
    %184 = tpu.matmul %183, %166, %cst_118 {dimension_numbers = #tpu.dot_dimension_numbers<[2], [1], [1], [2], [0, 0, 0, 1, 1, 2], [0], [0]>} : vector<2x8x8xbf16>, vector<2x8x8xbf16>, vector<2x8x8xf32> -> vector<2x8x8xf32>
    "tpu.trace_stop"() : () -> ()
    %185 = vector.shape_cast %184 : vector<2x8x8xf32> to vector<16x8xf32>
    %186 = arith.truncf %185 : vector<16x8xf32> to vector<16x8xbf16>
    %c0_119 = arith.constant 0 : index
    %c2_120 = arith.constant 2 : index
    %c0_121 = arith.constant 0 : index
    %c0_122 = arith.constant 0 : index
    %187 = vector.load %arg10[%c0_119, %c2_120, %c0_121, %c0_122] : memref<1x4x8x32xbf16, #tpu.memory_space<vmem>>, vector<1x1x8x32xbf16>
    %188 = vector.shape_cast %187 : vector<1x1x8x32xbf16> to vector<8x32xbf16>
    %cst_123 = arith.constant dense<0.000000e+00> : vector<16x32xf32>
    %189 = tpu.matmul %186, %188, %cst_123 {dimension_numbers = #tpu.dot_dimension_numbers<[1], [0], [0], [1], [0, 0, 1, 1], [], []>} : vector<16x8xbf16>, vector<8x32xbf16>, vector<16x32xf32> -> vector<16x32xf32>
    %190 = arith.addf %139, %189 : vector<16x32xf32>
    %c0_124 = arith.constant 0 : index
    %c3 = arith.constant 3 : index
    %c0_125 = arith.constant 0 : index
    %c0_126 = arith.constant 0 : index
    %191 = vector.load %arg4[%c0_124, %c3, %c0_125, %c0_126] : memref<1x4x32x8xbf16, #tpu.memory_space<vmem>>, vector<1x1x32x8xbf16>
    %192 = vector.shape_cast %191 : vector<1x1x32x8xbf16> to vector<32x8xbf16>
    %cst_127 = arith.constant dense<0.000000e+00> : vector<16x8xf32>
    %193 = tpu.matmul %30, %192, %cst_127 {dimension_numbers = #tpu.dot_dimension_numbers<[1], [0], [0], [1], [0, 0, 1, 1], [], []>} : vector<16x32xbf16>, vector<32x8xbf16>, vector<16x8xf32> -> vector<16x8xf32>
    %c0_128 = arith.constant 0 : index
    %c3_129 = arith.constant 3 : index
    %c0_130 = arith.constant 0 : index
    %c0_131 = arith.constant 0 : index
    %194 = vector.load %arg7[%c0_128, %c3_129, %c0_130, %c0_131] : memref<1x4x1x8xf32, #tpu.memory_space<vmem>>, vector<1x1x1x8xf32>
    %195 = vector.shape_cast %194 : vector<1x1x1x8xf32> to vector<1x8xf32>
    %196 = vector.broadcast %195 : vector<1x8xf32> to vector<16x8xf32>
    %197 = arith.addf %193, %196 : vector<16x8xf32>
    %c0_132 = arith.constant 0 : index
    %c3_133 = arith.constant 3 : index
    %c0_134 = arith.constant 0 : index
    %c0_135 = arith.constant 0 : index
    %198 = vector.load %arg5[%c0_132, %c3_133, %c0_134, %c0_135] : memref<1x4x32x8xbf16, #tpu.memory_space<vmem>>, vector<1x1x32x8xbf16>
    %199 = vector.shape_cast %198 : vector<1x1x32x8xbf16> to vector<32x8xbf16>
    %cst_136 = arith.constant dense<0.000000e+00> : vector<16x8xf32>
    %200 = tpu.matmul %30, %199, %cst_136 {dimension_numbers = #tpu.dot_dimension_numbers<[1], [0], [0], [1], [0, 0, 1, 1], [], []>} : vector<16x32xbf16>, vector<32x8xbf16>, vector<16x8xf32> -> vector<16x8xf32>
    %c0_137 = arith.constant 0 : index
    %c3_138 = arith.constant 3 : index
    %c0_139 = arith.constant 0 : index
    %c0_140 = arith.constant 0 : index
    %201 = vector.load %arg8[%c0_137, %c3_138, %c0_139, %c0_140] : memref<1x4x1x8xf32, #tpu.memory_space<vmem>>, vector<1x1x1x8xf32>
    %202 = vector.shape_cast %201 : vector<1x1x1x8xf32> to vector<1x8xf32>
    %203 = vector.broadcast %202 : vector<1x8xf32> to vector<16x8xf32>
    %204 = arith.addf %200, %203 : vector<16x8xf32>
    %c0_141 = arith.constant 0 : index
    %c3_142 = arith.constant 3 : index
    %c0_143 = arith.constant 0 : index
    %c0_144 = arith.constant 0 : index
    %205 = vector.load %arg6[%c0_141, %c3_142, %c0_143, %c0_144] : memref<1x4x32x8xbf16, #tpu.memory_space<vmem>>, vector<1x1x32x8xbf16>
    %206 = vector.shape_cast %205 : vector<1x1x32x8xbf16> to vector<32x8xbf16>
    %cst_145 = arith.constant dense<0.000000e+00> : vector<16x8xf32>
    %207 = tpu.matmul %30, %206, %cst_145 {dimension_numbers = #tpu.dot_dimension_numbers<[1], [0], [0], [1], [0, 0, 1, 1], [], []>} : vector<16x32xbf16>, vector<32x8xbf16>, vector<16x8xf32> -> vector<16x8xf32>
    %c0_146 = arith.constant 0 : index
    %c3_147 = arith.constant 3 : index
    %c0_148 = arith.constant 0 : index
    %c0_149 = arith.constant 0 : index
    %208 = vector.load %arg9[%c0_146, %c3_147, %c0_148, %c0_149] : memref<1x4x1x8xf32, #tpu.memory_space<vmem>>, vector<1x1x1x8xf32>
    %209 = vector.shape_cast %208 : vector<1x1x1x8xf32> to vector<1x8xf32>
    %210 = vector.broadcast %209 : vector<1x8xf32> to vector<16x8xf32>
    %211 = arith.addf %207, %210 : vector<16x8xf32>
    %212 = vector.shape_cast %197 : vector<16x8xf32> to vector<2x8x8xf32>
    %213 = arith.truncf %212 : vector<2x8x8xf32> to vector<2x8x8xbf16>
    %214 = vector.shape_cast %204 : vector<16x8xf32> to vector<2x8x8xf32>
    %215 = arith.truncf %214 : vector<2x8x8xf32> to vector<2x8x8xbf16>
    %216 = vector.shape_cast %211 : vector<16x8xf32> to vector<2x8x8xf32>
    %217 = arith.truncf %216 : vector<2x8x8xf32> to vector<2x8x8xbf16>
    "tpu.trace_start"() <{level = 10 : i32, message = "bqd,bkd->bqk"}> : () -> ()
    %cst_150 = arith.constant dense<0.000000e+00> : vector<2x8x8xf32>
    %218 = tpu.matmul %213, %215, %cst_150 {dimension_numbers = #tpu.dot_dimension_numbers<[2], [2], [1], [1], [0, 0, 0, 1, 1, 1], [0], [0]>} : vector<2x8x8xbf16>, vector<2x8x8xbf16>, vector<2x8x8xf32> -> vector<2x8x8xf32>
    "tpu.trace_stop"() : () -> ()
    %cst_151 = arith.constant 0.353553385 : f32
    %219 = vector.broadcast %cst_151 : f32 to vector<2x8x8xf32>
    %220 = arith.mulf %218, %219 : vector<2x8x8xf32>
    %221 = vector.shape_cast %36 : vector<8x8xf32> to vector<1x8x8xf32>
    %222 = vector.broadcast %221 : vector<1x8x8xf32> to vector<2x8x8xf32>
    %223 = arith.addf %220, %222 : vector<2x8x8xf32>
    %cst_152 = arith.constant dense<0xFF800000> : vector<2x8xf32>
    %224 = vector.multi_reduction <maximumf>, %223, %cst_152 [2] : vector<2x8x8xf32> to vector<2x8xf32>
    %225 = vector.shape_cast %224 : vector<2x8xf32> to vector<2x8x1xf32>
    %226 = vector.broadcast %225 : vector<2x8x1xf32> to vector<2x8x8xf32>
    %227 = arith.subf %223, %226 : vector<2x8x8xf32>
    %228 = math.exp %227 : vector<2x8x8xf32>
    %cst_153 = arith.constant dense<0.000000e+00> : vector<2x8xf32>
    %229 = vector.multi_reduction <add>, %228, %cst_153 [2] : vector<2x8x8xf32> to vector<2x8xf32>
    %230 = vector.shape_cast %229 : vector<2x8xf32> to vector<2x8x1xf32>
    %231 = tpu.reciprocal %230 {approx = true} : vector<2x8x1xf32> -> vector<2x8x1xf32>
    %232 = vector.broadcast %231 : vector<2x8x1xf32> to vector<2x8x8xf32>
    %233 = arith.mulf %228, %232 : vector<2x8x8xf32>
    %234 = arith.truncf %233 : vector<2x8x8xf32> to vector<2x8x8xbf16>
    "tpu.trace_start"() <{level = 10 : i32, message = "bqk,bkd->bqd"}> : () -> ()
    %cst_154 = arith.constant dense<0.000000e+00> : vector<2x8x8xf32>
    %235 = tpu.matmul %234, %217, %cst_154 {dimension_numbers = #tpu.dot_dimension_numbers<[2], [1], [1], [2], [0, 0, 0, 1, 1, 2], [0], [0]>} : vector<2x8x8xbf16>, vector<2x8x8xbf16>, vector<2x8x8xf32> -> vector<2x8x8xf32>
    "tpu.trace_stop"() : () -> ()
    %236 = vector.shape_cast %235 : vector<2x8x8xf32> to vector<16x8xf32>
    %237 = arith.truncf %236 : vector<16x8xf32> to vector<16x8xbf16>
    %c0_155 = arith.constant 0 : index
    %c3_156 = arith.constant 3 : index
    %c0_157 = arith.constant 0 : index
    %c0_158 = arith.constant 0 : index
    %238 = vector.load %arg10[%c0_155, %c3_156, %c0_157, %c0_158] : memref<1x4x8x32xbf16, #tpu.memory_space<vmem>>, vector<1x1x8x32xbf16>
    %239 = vector.shape_cast %238 : vector<1x1x8x32xbf16> to vector<8x32xbf16>
    %cst_159 = arith.constant dense<0.000000e+00> : vector<16x32xf32>
    %240 = tpu.matmul %237, %239, %cst_159 {dimension_numbers = #tpu.dot_dimension_numbers<[1], [0], [0], [1], [0, 0, 1, 1], [], []>} : vector<16x8xbf16>, vector<8x32xbf16>, vector<16x32xf32> -> vector<16x32xf32>
    %241 = arith.addf %190, %240 : vector<16x32xf32>
    %242 = arith.addf %3, %241 : vector<16x32xf32>
    %c0_160 = arith.constant 0 : index
    %c0_161 = arith.constant 0 : index
    %c0_162 = arith.constant 0 : index
    %243 = vector.load %arg11[%c0_160, %c0_161, %c0_162] : memref<1x1x32xf32, #tpu.memory_space<vmem>>, vector<1x1x32xf32>
    %244 = vector.shape_cast %243 : vector<1x1x32xf32> to vector<1x32xf32>
    %245 = vector.broadcast %244 : vector<1x32xf32> to vector<16x32xf32>
    %246 = arith.addf %242, %245 : vector<16x32xf32>
    %c0_163 = arith.constant 0 : index
    %c0_164 = arith.constant 0 : index
    %c0_165 = arith.constant 0 : index
    %247 = vector.load %arg12[%c0_163, %c0_164, %c0_165] : memref<1x1x32xf32, #tpu.memory_space<vmem>>, vector<1x1x32xf32>
    %248 = vector.shape_cast %247 : vector<1x1x32xf32> to vector<1x32xf32>
    %c0_166 = arith.constant 0 : index
    %c0_167 = arith.constant 0 : index
    %c0_168 = arith.constant 0 : index
    %249 = vector.load %arg13[%c0_166, %c0_167, %c0_168] : memref<1x1x32xf32, #tpu.memory_space<vmem>>, vector<1x1x32xf32>
    %250 = vector.shape_cast %249 : vector<1x1x32xf32> to vector<1x32xf32>
    %cst_169 = arith.constant dense<0.000000e+00> : vector<16xf32>
    %251 = vector.multi_reduction <add>, %246, %cst_169 [1] : vector<16x32xf32> to vector<16xf32>
    %252 = vector.shape_cast %251 : vector<16xf32> to vector<16x1xf32>
    %cst_170 = arith.constant 3.200000e+01 : f32
    %253 = vector.broadcast %cst_170 : f32 to vector<16x1xf32>
    %254 = arith.divf %252, %253 : vector<16x1xf32>
    %255 = vector.broadcast %254 : vector<16x1xf32> to vector<16x32xf32>
    %256 = arith.subf %246, %255 : vector<16x32xf32>
    %257 = arith.mulf %256, %256 : vector<16x32xf32>
    %cst_171 = arith.constant dense<0.000000e+00> : vector<16xf32>
    %258 = vector.multi_reduction <add>, %257, %cst_171 [1] : vector<16x32xf32> to vector<16xf32>
    %259 = vector.shape_cast %258 : vector<16xf32> to vector<16x1xf32>
    %cst_172 = arith.constant 3.200000e+01 : f32
    %260 = vector.broadcast %cst_172 : f32 to vector<16x1xf32>
    %261 = arith.divf %259, %260 : vector<16x1xf32>
    %262 = vector.broadcast %254 : vector<16x1xf32> to vector<16x32xf32>
    %263 = arith.subf %246, %262 : vector<16x32xf32>
    %cst_173 = arith.constant 9.99999974E-6 : f32
    %264 = vector.broadcast %cst_173 : f32 to vector<16x1xf32>
    %265 = arith.addf %261, %264 : vector<16x1xf32>
    %266 = math.rsqrt %265 : vector<16x1xf32>
    %267 = vector.broadcast %266 : vector<16x1xf32> to vector<16x32xf32>
    %268 = arith.mulf %263, %267 : vector<16x32xf32>
    %269 = vector.broadcast %248 : vector<1x32xf32> to vector<16x32xf32>
    %270 = arith.mulf %268, %269 : vector<16x32xf32>
    %271 = vector.broadcast %250 : vector<1x32xf32> to vector<16x32xf32>
    %272 = arith.addf %270, %271 : vector<16x32xf32>
    %273 = arith.truncf %272 : vector<16x32xf32> to vector<16x32xbf16>
    %c0_174 = arith.constant 0 : index
    %c0_175 = arith.constant 0 : index
    %c0_176 = arith.constant 0 : index
    %274 = vector.load %arg14[%c0_174, %c0_175, %c0_176] : memref<1x32x128xbf16, #tpu.memory_space<vmem>>, vector<1x32x128xbf16>
    %275 = vector.shape_cast %274 : vector<1x32x128xbf16> to vector<32x128xbf16>
    %cst_177 = arith.constant dense<0.000000e+00> : vector<16x128xf32>
    %276 = tpu.matmul %273, %275, %cst_177 {dimension_numbers = #tpu.dot_dimension_numbers<[1], [0], [0], [1], [0, 0, 1, 1], [], []>} : vector<16x32xbf16>, vector<32x128xbf16>, vector<16x128xf32> -> vector<16x128xf32>
    %c0_178 = arith.constant 0 : index
    %c0_179 = arith.constant 0 : index
    %c0_180 = arith.constant 0 : index
    %277 = vector.load %arg15[%c0_178, %c0_179, %c0_180] : memref<1x1x128xf32, #tpu.memory_space<vmem>>, vector<1x1x128xf32>
    %278 = vector.shape_cast %277 : vector<1x1x128xf32> to vector<1x128xf32>
    %279 = vector.broadcast %278 : vector<1x128xf32> to vector<16x128xf32>
    %280 = arith.addf %276, %279 : vector<16x128xf32>
    %cst_181 = arith.constant 5.000000e-01 : f32
    %281 = vector.broadcast %cst_181 : f32 to vector<16x128xf32>
    %282 = arith.mulf %281, %280 : vector<16x128xf32>
    %cst_182 = arith.constant 4.471500e-02 : f32
    %283 = vector.broadcast %cst_182 : f32 to vector<16x128xf32>
    %284 = arith.mulf %283, %280 : vector<16x128xf32>
    %285 = arith.mulf %284, %280 : vector<16x128xf32>
    %286 = arith.mulf %285, %280 : vector<16x128xf32>
    %287 = arith.addf %280, %286 : vector<16x128xf32>
    %cst_183 = arith.constant 0.797884583 : f32
    %288 = vector.broadcast %cst_183 : f32 to vector<16x128xf32>
    %289 = arith.mulf %288, %287 : vector<16x128xf32>
    %290 = math.tanh %289 : vector<16x128xf32>
    %cst_184 = arith.constant 1.000000e+00 : f32
    %291 = vector.broadcast %cst_184 : f32 to vector<16x128xf32>
    %292 = arith.addf %291, %290 : vector<16x128xf32>
    %293 = arith.mulf %282, %292 : vector<16x128xf32>
    %294 = arith.truncf %293 : vector<16x128xf32> to vector<16x128xbf16>
    %c0_185 = arith.constant 0 : index
    %c0_186 = arith.constant 0 : index
    %c0_187 = arith.constant 0 : index
    %295 = vector.load %arg16[%c0_185, %c0_186, %c0_187] : memref<1x128x32xbf16, #tpu.memory_space<vmem>>, vector<1x128x32xbf16>
    %296 = vector.shape_cast %295 : vector<1x128x32xbf16> to vector<128x32xbf16>
    %cst_188 = arith.constant dense<0.000000e+00> : vector<16x32xf32>
    %297 = tpu.matmul %294, %296, %cst_188 {dimension_numbers = #tpu.dot_dimension_numbers<[1], [0], [0], [1], [0, 0, 1, 1], [], []>} : vector<16x128xbf16>, vector<128x32xbf16>, vector<16x32xf32> -> vector<16x32xf32>
    %c0_189 = arith.constant 0 : index
    %c0_190 = arith.constant 0 : index
    %c0_191 = arith.constant 0 : index
    %298 = vector.load %arg17[%c0_189, %c0_190, %c0_191] : memref<1x1x32xf32, #tpu.memory_space<vmem>>, vector<1x1x32xf32>
    %299 = vector.shape_cast %298 : vector<1x1x32xf32> to vector<1x32xf32>
    %300 = vector.broadcast %299 : vector<1x32xf32> to vector<16x32xf32>
    %301 = arith.addf %297, %300 : vector<16x32xf32>
    %302 = arith.addf %246, %301 : vector<16x32xf32>
    %c0_192 = arith.constant 0 : index
    %c0_193 = arith.constant 0 : index
    %303 = vector.load %arg18[%c0_192, %c0_193] : memref<16x32xf32, #tpu.memory_space<vmem>>, vector<16x32xf32>
    tpu.vector_store %arg18[%c0_192, %c0_193], %302 {strides = array<i32>} : memref<16x32xf32, #tpu.memory_space<vmem>>, vector<16x32xf32>,
    return
  }
  func.func @transform_0(%arg0: i32) -> (i32, i32) {
    %c0_i32 = arith.constant 0 : i32
    %c0_i32_0 = arith.constant 0 : i32
    %c0_i32_1 = arith.constant 0 : i32
    return %c0_i32, %c0_i32_0 : i32, i32
  }
  func.func @transform_1(%arg0: i32) -> (i32, i32, i32) {
    %c0_i32 = arith.constant 0 : i32
    %c0_i32_0 = arith.constant 0 : i32
    %c0_i32_1 = arith.constant 0 : i32
    return %arg0, %c0_i32, %c0_i32_0 : i32, i32, i32
  }
  func.func @transform_2(%arg0: i32) -> (i32, i32, i32) {
    %c0_i32 = arith.constant 0 : i32
    %c0_i32_0 = arith.constant 0 : i32
    %c0_i32_1 = arith.constant 0 : i32
    return %arg0, %c0_i32, %c0_i32_0 : i32, i32, i32
  }
  func.func @transform_3(%arg0: i32) -> (i32, i32, i32, i32) {
    %c0_i32 = arith.constant 0 : i32
    %c0_i32_0 = arith.constant 0 : i32
    %c0_i32_1 = arith.constant 0 : i32
    %c0_i32_2 = arith.constant 0 : i32
    return %arg0, %c0_i32, %c0_i32_0, %c0_i32_1 : i32, i32, i32, i32
  }
  func.func @transform_4(%arg0: i32) -> (i32, i32, i32, i32) {
    %c0_i32 = arith.constant 0 : i32
    %c0_i32_0 = arith.constant 0 : i32
    %c0_i32_1 = arith.constant 0 : i32
    %c0_i32_2 = arith.constant 0 : i32
    return %arg0, %c0_i32, %c0_i32_0, %c0_i32_1 : i32, i32, i32, i32
  }
  func.func @transform_5(%arg0: i32) -> (i32, i32, i32, i32) {
    %c0_i32 = arith.constant 0 : i32
    %c0_i32_0 = arith.constant 0 : i32
    %c0_i32_1 = arith.constant 0 : i32
    %c0_i32_2 = arith.constant 0 : i32
    return %arg0, %c0_i32, %c0_i32_0, %c0_i32_1 : i32, i32, i32, i32
  }
  func.func @transform_6(%arg0: i32) -> (i32, i32, i32, i32) {
    %c0_i32 = arith.constant 0 : i32
    %c0_i32_0 = arith.constant 0 : i32
    %c0_i32_1 = arith.constant 0 : i32
    %c0_i32_2 = arith.constant 0 : i32
    return %arg0, %c0_i32, %c0_i32_0, %c0_i32_1 : i32, i32, i32, i32
  }
  func.func @transform_7(%arg0: i32) -> (i32, i32, i32, i32) {
    %c0_i32 = arith.constant 0 : i32
    %c0_i32_0 = arith.constant 0 : i32
    %c0_i32_1 = arith.constant 0 : i32
    %c0_i32_2 = arith.constant 0 : i32
    return %arg0, %c0_i32, %c0_i32_0, %c0_i32_1 : i32, i32, i32, i32
  }
  func.func @transform_8(%arg0: i32) -> (i32, i32, i32, i32) {
    %c0_i32 = arith.constant 0 : i32
    %c0_i32_0 = arith.constant 0 : i32
    %c0_i32_1 = arith.constant 0 : i32
    %c0_i32_2 = arith.constant 0 : i32
    return %arg0, %c0_i32, %c0_i32_0, %c0_i32_1 : i32, i32, i32, i32
  }
  func.func @transform_9(%arg0: i32) -> (i32, i32, i32, i32) {
    %c0_i32 = arith.constant 0 : i32
    %c0_i32_0 = arith.constant 0 : i32
    %c0_i32_1 = arith.constant 0 : i32
    %c0_i32_2 = arith.constant 0 : i32
    return %arg0, %c0_i32, %c0_i32_0, %c0_i32_1 : i32, i32, i32, i32
  }
  func.func @transform_10(%arg0: i32) -> (i32, i32, i32) {
    %c0_i32 = arith.constant 0 : i32
    %c0_i32_0 = arith.constant 0 : i32
    %c0_i32_1 = arith.constant 0 : i32
    return %arg0, %c0_i32, %c0_i32_0 : i32, i32, i32
  }
  func.func @transform_11(%arg0: i32) -> (i32, i32, i32) {
    %c0_i32 = arith.constant 0 : i32
    %c0_i32_0 = arith.constant 0 : i32
    %c0_i32_1 = arith.constant 0 : i32
    return %arg0, %c0_i32, %c0_i32_0 : i32, i32, i32
  }
  func.func @transform_12(%arg0: i32) -> (i32, i32, i32) {
    %c0_i32 = arith.constant 0 : i32
    %c0_i32_0 = arith.constant 0 : i32
    %c0_i32_1 = arith.constant 0 : i32
    return %arg0, %c0_i32, %c0_i32_0 : i32, i32, i32
  }
  func.func @transform_13(%arg0: i32) -> (i32, i32, i32) {
    %c0_i32 = arith.constant 0 : i32
    %c0_i32_0 = arith.constant 0 : i32
    %c0_i32_1 = arith.constant 0 : i32
    return %arg0, %c0_i32, %c0_i32_0 : i32, i32, i32
  }
  func.func @transform_14(%arg0: i32) -> (i32, i32, i32) {
    %c0_i32 = arith.constant 0 : i32
    %c0_i32_0 = arith.constant 0 : i32
    %c0_i32_1 = arith.constant 0 : i32
    return %arg0, %c0_i32, %c0_i32_0 : i32, i32, i32
  }
  func.func @transform_15(%arg0: i32) -> (i32, i32, i32) {
    %c0_i32 = arith.constant 0 : i32
    %c0_i32_0 = arith.constant 0 : i32
    %c0_i32_1 = arith.constant 0 : i32
    return %arg0, %c0_i32, %c0_i32_0 : i32, i32, i32
  }
  func.func @transform_16(%arg0: i32) -> (i32, i32, i32) {
    %c0_i32 = arith.constant 0 : i32
    %c0_i32_0 = arith.constant 0 : i32
    %c0_i32_1 = arith.constant 0 : i32
    return %arg0, %c0_i32, %c0_i32_0 : i32, i32, i32
  }
  func.func @transform_17(%arg0: i32) -> (i32, i32) {
    %c0_i32 = arith.constant 0 : i32
    %c0_i32_0 = arith.constant 0 : i32
    %c0_i32_1 = arith.constant 0 : i32
    return %c0_i32, %c0_i32_0 : i32, i32
  }
}

</mosaic_0001>

<llo_original>
// kernel: tpu_custom_call.1
$region0: #{tpu_custom_call.1}
  #allocation0 [shape = 'u32[]', space=smem, size = 0x4, offset = 0x4, fixed_abs, tag = 'smem constant byte address 0x4 - core index']
  #allocation1 [shape = 'u32[72,128]{1,0:T(1,128)}', space=vmem, size = 0x9000, scoped, tag = 'internal scratch']
  %s0 = inlined_call_operand.vmem [shape: f32[16,32], index: 0, kind: input, shape index: {}]
  %s1 = inlined_call_operand.vmem [shape: f32[2,1,32], index: 1, kind: input, shape index: {}]
  %s2 = inlined_call_operand.vmem [shape: f32[2,1,32], index: 2, kind: input, shape index: {}]
  %s3 = inlined_call_operand.vmem [shape: bf16[2,4,32,8], index: 3, kind: input, shape index: {}]
  %s4 = inlined_call_operand.vmem [shape: bf16[2,4,32,8], index: 4, kind: input, shape index: {}]
  %s5 = inlined_call_operand.vmem [shape: bf16[2,4,32,8], index: 5, kind: input, shape index: {}]
  %s6 = inlined_call_operand.vmem [shape: f32[2,4,1,8], index: 6, kind: input, shape index: {}]
  %s7 = inlined_call_operand.vmem [shape: f32[2,4,1,8], index: 7, kind: input, shape index: {}]
  %s8 = inlined_call_operand.vmem [shape: f32[2,4,1,8], index: 8, kind: input, shape index: {}]
  %s9 = inlined_call_operand.vmem [shape: bf16[2,4,8,32], index: 9, kind: input, shape index: {}]
  %s10 = inlined_call_operand.vmem [shape: f32[2,1,32], index: 10, kind: input, shape index: {}]
  %s11 = inlined_call_operand.vmem [shape: f32[2,1,32], index: 11, kind: input, shape index: {}]
  %s12 = inlined_call_operand.vmem [shape: f32[2,1,32], index: 12, kind: input, shape index: {}]
  %s13 = inlined_call_operand.vmem [shape: bf16[2,32,128], index: 13, kind: input, shape index: {}]
  %s14 = inlined_call_operand.vmem [shape: f32[2,1,128], index: 14, kind: input, shape index: {}]
  %s15 = inlined_call_operand.vmem [shape: bf16[2,128,32], index: 15, kind: input, shape index: {}]
  %s16 = inlined_call_operand.vmem [shape: f32[2,1,32], index: 16, kind: input, shape index: {}]
  %s17 = inlined_call_operand.hbm [shape: f32[16,32], index: 17, kind: output, shape index: {}]
  %s18 = sld [smem:[#allocation0]]
  $region105: #{tpu_custom_call.1} parent=0
    _
  %s20 = ssub.s32 1, %s18
  %s21 = scalar_select 0, %s20, %s18
  $region1: #{tpu_custom_call.1} parent=0
    #allocation2 [shape = 'u8[8192]{0}', space=vmem, size = 0x2000, scoped, tag = 'output window, operand 0, single buffered']
    #allocation3 [shape = 's32[2]{0}', space=sflag, size = 0x8, scoped, tag = 'scoped memory for tpu_custom_call.1']
    %22 = vsyncpa [#allocation3], 0
    loop: start=0, step=1, limit=4
    $region2: #{tpu_custom_call.1} parent=1 // loop_pre_header
      _
    $region3: #{tpu_custom_call.1} parent=1 // loop_header
      %s24 = sphi 0, %s28
      %p25 = scmp.ge.s32.totalorder %s24, 4
      %s32 = sphi 0, %s32
      %s34 = sphi 0, %s32
      %s35 = sphi 0, %s34
      %s49 = sphi 0, %s35
      %s55 = sphi 0, %s57
      %s58 = sphi 0, %s55
      %s59 = sphi 0, %s58
      %s75 = sphi 0, %s59
      %s81 = sphi 0, %s83
      %s84 = sphi 0, %s81
      %s85 = sphi 0, %s84
      %s101 = sphi 0, %s85
      %s107 = sphi 0, %s109
      %s110 = sphi 0, %s107
      %s111 = sphi 0, %s110
      %s127 = sphi 0, %s111
      %s133 = sphi 0, %s135
      %s136 = sphi 0, %s133
      %s137 = sphi 0, %s136
      %s153 = sphi 0, %s137
      %s159 = sphi 0, %s161
      %s162 = sphi 0, %s159
      %s163 = sphi 0, %s162
      %s179 = sphi 0, %s163
      %s185 = sphi 0, %s187
      %s188 = sphi 0, %s185
      %s189 = sphi 0, %s188
      %s205 = sphi 0, %s189
      %s211 = sphi 0, %s213
      %s214 = sphi 0, %s211
      %s215 = sphi 0, %s214
      %s231 = sphi 0, %s215
      %s237 = sphi 0, %s239
      %s240 = sphi 0, %s237
      %s241 = sphi 0, %s240
      %s257 = sphi 0, %s241
      %s263 = sphi 0, %s265
      %s266 = sphi 0, %s263
      %s267 = sphi 0, %s266
      %s283 = sphi 0, %s267
      %s289 = sphi 0, %s291
      %s292 = sphi 0, %s289
      %s293 = sphi 0, %s292
      %s309 = sphi 0, %s293
      %s315 = sphi 0, %s317
      %s318 = sphi 0, %s315
      %s319 = sphi 0, %s318
      %s335 = sphi 0, %s319
      %s341 = sphi 0, %s343
      %s344 = sphi 0, %s341
      %s345 = sphi 0, %s344
      %s361 = sphi 0, %s345
      %s367 = sphi 0, %s369
      %s370 = sphi 0, %s367
      %s371 = sphi 0, %s370
      %s387 = sphi 0, %s371
      %s393 = sphi 0, %s395
      %s396 = sphi 0, %s393
      %s397 = sphi 0, %s396
      %s413 = sphi 0, %s397
      %s419 = sphi 0, %s421
      %s422 = sphi 0, %s419
      %s423 = sphi 0, %s422
      %s439 = sphi 0, %s423
      %s445 = sphi 0, %s447
      %s448 = sphi 0, %s445
      %s449 = sphi 0, %s448
      %s465 = sphi 0, %s449
      %s469 = sphi 0, %s469
      %s471 = sphi 0, %s469
      %s472 = sphi 0, %s471
      %s486 = sphi 0, %s472
    $region4: #{tpu_custom_call.1} parent=1 // loop_header_branch
      %27 = sbr.rel (%p25) target = $region8
    $region5: #{tpu_custom_call.1} parent=1 // loop_body
      %s29 = ssub.s32 %s24, 1
      %s30 = ssub.s32 %s24, 2
      %s31 = sadd.s32 %s24, 1
      %s33 = sadd.s32 %s32, 1
      %p36 = scmp.eq.s32.totalorder %s24, 1
      %p37 = scmp.ne.s32.totalorder %s32, %s34
      %p38 = scmp.eq.s32.totalorder %s24, 0
      %p39 = por %p37, %p38
      %p40 = scmp.ne.s32.totalorder %s32, %s34
      %p41 = scmp.eq.s32.totalorder %s29, 1
      %p42 = por %p40, %p41
      %p43 = scmp.ne.s32.totalorder %s34, %s35
      %p44 = scmp.eq.s32.totalorder %s29, 0
      %p45 = por %p43, %p44
      %p46 = scmp.ne.s32.totalorder %s34, %s35
      %p47 = scmp.eq.s32.totalorder %s30, 1
      %p48 = por %p46, %p47
      %p50 = scmp.ne.s32.totalorder %s35, %s49
      %p51 = scmp.eq.s32.totalorder %s30, 0
      %p52 = por %p50, %p51
      %s53 = ssub.s32 %s24, %s31
      %p54 = scmp.eq.s32.totalorder %s53, 0
      %s56 = sadd.s32 %s55, 1
      %s57 = scalar_select %p54, %s55, %s56
      %p60 = pneg %p54
      %p61 = scmp.eq.s32.totalorder %s24, 1
      %p62 = por %p60, %p61
      %p63 = scmp.ne.s32.totalorder %s55, %s58
      %p64 = scmp.eq.s32.totalorder %s24, 0
      %p65 = por %p63, %p64
      %p66 = scmp.ne.s32.totalorder %s55, %s58
      %p67 = scmp.eq.s32.totalorder %s29, 1
      %p68 = por %p66, %p67
      %p69 = scmp.ne.s32.totalorder %s58, %s59
      %p70 = scmp.eq.s32.totalorder %s29, 0
      %p71 = por %p69, %p70
      %p72 = scmp.ne.s32.totalorder %s58, %s59
      %p73 = scmp.eq.s32.totalorder %s30, 1
      %p74 = por %p72, %p73
      %p76 = scmp.ne.s32.totalorder %s59, %s75
      %p77 = scmp.eq.s32.totalorder %s30, 0
      %p78 = por %p76, %p77
      %s79 = ssub.s32 %s24, %s31
      %p80 = scmp.eq.s32.totalorder %s79, 0
      %s82 = sadd.s32 %s81, 1
      %s83 = scalar_select %p80, %s81, %s82
      %p86 = pneg %p80
      %p87 = scmp.eq.s32.totalorder %s24, 1
      %p88 = por %p86, %p87
      %p89 = scmp.ne.s32.totalorder %s81, %s84
      %p90 = scmp.eq.s32.totalorder %s24, 0
      %p91 = por %p89, %p90
      %p92 = scmp.ne.s32.totalorder %s81, %s84
      %p93 = scmp.eq.s32.totalorder %s29, 1
      %p94 = por %p92, %p93
      %p95 = scmp.ne.s32.totalorder %s84, %s85
      %p96 = scmp.eq.s32.totalorder %s29, 0
      %p97 = por %p95, %p96
      %p98 = scmp.ne.s32.totalorder %s84, %s85
      %p99 = scmp.eq.s32.totalorder %s30, 1
      %p100 = por %p98, %p99
      %p102 = scmp.ne.s32.totalorder %s85, %s101
      %p103 = scmp.eq.s32.totalorder %s30, 0
      %p104 = por %p102, %p103
      %s105 = ssub.s32 %s24, %s31
      %p106 = scmp.eq.s32.totalorder %s105, 0
      %s108 = sadd.s32 %s107, 1
      %s109 = scalar_select %p106, %s107, %s108
      %p112 = pneg %p106
      %p113 = scmp.eq.s32.totalorder %s24, 1
      %p114 = por %p112, %p113
      %p115 = scmp.ne.s32.totalorder %s107, %s110
      %p116 = scmp.eq.s32.totalorder %s24, 0
      %p117 = por %p115, %p116
      %p118 = scmp.ne.s32.totalorder %s107, %s110
      %p119 = scmp.eq.s32.totalorder %s29, 1
      %p120 = por %p118, %p119
      %p121 = scmp.ne.s32.totalorder %s110, %s111
      %p122 = scmp.eq.s32.totalorder %s29, 0
      %p123 = por %p121, %p122
      %p124 = scmp.ne.s32.totalorder %s110, %s111
      %p125 = scmp.eq.s32.totalorder %s30, 1
      %p126 = por %p124, %p125
      %p128 = scmp.ne.s32.totalorder %s111, %s127
      %p129 = scmp.eq.s32.totalorder %s30, 0
      %p130 = por %p128, %p129
      %s131 = ssub.s32 %s24, %s31
      %p132 = scmp.eq.s32.totalorder %s131, 0
      %s134 = sadd.s32 %s133, 1
      %s135 = scalar_select %p132, %s133, %s134
      %p138 = pneg %p132
      %p139 = scmp.eq.s32.totalorder %s24, 1
      %p140 = por %p138, %p139
      %p141 = scmp.ne.s32.totalorder %s133, %s136
      %p142 = scmp.eq.s32.totalorder %s24, 0
      %p143 = por %p141, %p142
      %p144 = scmp.ne.s32.totalorder %s133, %s136
      %p145 = scmp.eq.s32.totalorder %s29, 1
      %p146 = por %p144, %p145
      %p147 = scmp.ne.s32.totalorder %s136, %s137
      %p148 = scmp.eq.s32.totalorder %s29, 0
      %p149 = por %p147, %p148
      %p150 = scmp.ne.s32.totalorder %s136, %s137
      %p151 = scmp.eq.s32.totalorder %s30, 1
      %p152 = por %p150, %p151
      %p154 = scmp.ne.s32.totalorder %s137, %s153
      %p155 = scmp.eq.s32.totalorder %s30, 0
      %p156 = por %p154, %p155
      %s157 = ssub.s32 %s24, %s31
      %p158 = scmp.eq.s32.totalorder %s157, 0
      %s160 = sadd.s32 %s159, 1
      %s161 = scalar_select %p158, %s159, %s160
      %p164 = pneg %p158
      %p165 = scmp.eq.s32.totalorder %s24, 1
      %p166 = por %p164, %p165
      %p167 = scmp.ne.s32.totalorder %s159, %s162
      %p168 = scmp.eq.s32.totalorder %s24, 0
      %p169 = por %p167, %p168
      %p170 = scmp.ne.s32.totalorder %s159, %s162
      %p171 = scmp.eq.s32.totalorder %s29, 1
      %p172 = por %p170, %p171
      %p173 = scmp.ne.s32.totalorder %s162, %s163
      %p174 = scmp.eq.s32.totalorder %s29, 0
      %p175 = por %p173, %p174
      %p176 = scmp.ne.s32.totalorder %s162, %s163
      %p177 = scmp.eq.s32.totalorder %s30, 1
      %p178 = por %p176, %p177
      %p180 = scmp.ne.s32.totalorder %s163, %s179
      %p181 = scmp.eq.s32.totalorder %s30, 0
      %p182 = por %p180, %p181
      %s183 = ssub.s32 %s24, %s31
      %p184 = scmp.eq.s32.totalorder %s183, 0
      %s186 = sadd.s32 %s185, 1
      %s187 = scalar_select %p184, %s185, %s186
      %p190 = pneg %p184
      %p191 = scmp.eq.s32.totalorder %s24, 1
      %p192 = por %p190, %p191
      %p193 = scmp.ne.s32.totalorder %s185, %s188
      %p194 = scmp.eq.s32.totalorder %s24, 0
      %p195 = por %p193, %p194
      %p196 = scmp.ne.s32.totalorder %s185, %s188
      %p197 = scmp.eq.s32.totalorder %s29, 1
      %p198 = por %p196, %p197
      %p199 = scmp.ne.s32.totalorder %s188, %s189
      %p200 = scmp.eq.s32.totalorder %s29, 0
      %p201 = por %p199, %p200
      %p202 = scmp.ne.s32.totalorder %s188, %s189
      %p203 = scmp.eq.s32.totalorder %s30, 1
      %p204 = por %p202, %p203
      %p206 = scmp.ne.s32.totalorder %s189, %s205
      %p207 = scmp.eq.s32.totalorder %s30, 0
      %p208 = por %p206, %p207
      %s209 = ssub.s32 %s24, %s31
      %p210 = scmp.eq.s32.totalorder %s209, 0
      %s212 = sadd.s32 %s211, 1
      %s213 = scalar_select %p210, %s211, %s212
      %p216 = pneg %p210
      %p217 = scmp.eq.s32.totalorder %s24, 1
      %p218 = por %p216, %p217
      %p219 = scmp.ne.s32.totalorder %s211, %s214
      %p220 = scmp.eq.s32.totalorder %s24, 0
      %p221 = por %p219, %p220
      %p222 = scmp.ne.s32.totalorder %s211, %s214
      %p223 = scmp.eq.s32.totalorder %s29, 1
      %p224 = por %p222, %p223
      %p225 = scmp.ne.s32.totalorder %s214, %s215
      %p226 = scmp.eq.s32.totalorder %s29, 0
      %p227 = por %p225, %p226
      %p228 = scmp.ne.s32.totalorder %s214, %s215
      %p229 = scmp.eq.s32.totalorder %s30, 1
      %p230 = por %p228, %p229
      %p232 = scmp.ne.s32.totalorder %s215, %s231
      %p233 = scmp.eq.s32.totalorder %s30, 0
      %p234 = por %p232, %p233
      %s235 = ssub.s32 %s24, %s31
      %p236 = scmp.eq.s32.totalorder %s235, 0
      %s238 = sadd.s32 %s237, 1
      %s239 = scalar_select %p236, %s237, %s238
      %p242 = pneg %p236
      %p243 = scmp.eq.s32.totalorder %s24, 1
      %p244 = por %p242, %p243
      %p245 = scmp.ne.s32.totalorder %s237, %s240
      %p246 = scmp.eq.s32.totalorder %s24, 0
      %p247 = por %p245, %p246
      %p248 = scmp.ne.s32.totalorder %s237, %s240
      %p249 = scmp.eq.s32.totalorder %s29, 1
      %p250 = por %p248, %p249
      %p251 = scmp.ne.s32.totalorder %s240, %s241
      %p252 = scmp.eq.s32.totalorder %s29, 0
      %p253 = por %p251, %p252
      %p254 = scmp.ne.s32.totalorder %s240, %s241
      %p255 = scmp.eq.s32.totalorder %s30, 1
      %p256 = por %p254, %p255
      %p258 = scmp.ne.s32.totalorder %s241, %s257
      %p259 = scmp.eq.s32.totalorder %s30, 0
      %p260 = por %p258, %p259
      %s261 = ssub.s32 %s24, %s31
      %p262 = scmp.eq.s32.totalorder %s261, 0
      %s264 = sadd.s32 %s263, 1
      %s265 = scalar_select %p262, %s263, %s264
      %p268 = pneg %p262
      %p269 = scmp.eq.s32.totalorder %s24, 1
      %p270 = por %p268, %p269
      %p271 = scmp.ne.s32.totalorder %s263, %s266
      %p272 = scmp.eq.s32.totalorder %s24, 0
      %p273 = por %p271, %p272
      %p274 = scmp.ne.s32.totalorder %s263, %s266
      %p275 = scmp.eq.s32.totalorder %s29, 1
      %p276 = por %p274, %p275
      %p277 = scmp.ne.s32.totalorder %s266, %s267
      %p278 = scmp.eq.s32.totalorder %s29, 0
      %p279 = por %p277, %p278
      %p280 = scmp.ne.s32.totalorder %s266, %s267
      %p281 = scmp.eq.s32.totalorder %s30, 1
      %p282 = por %p280, %p281
      %p284 = scmp.ne.s32.totalorder %s267, %s283
      %p285 = scmp.eq.s32.totalorder %s30, 0
      %p286 = por %p284, %p285
      %s287 = ssub.s32 %s24, %s31
      %p288 = scmp.eq.s32.totalorder %s287, 0
      %s290 = sadd.s32 %s289, 1
      %s291 = scalar_select %p288, %s289, %s290
      %p294 = pneg %p288
      %p295 = scmp.eq.s32.totalorder %s24, 1
      %p296 = por %p294, %p295
      %p297 = scmp.ne.s32.totalorder %s289, %s292
      %p298 = scmp.eq.s32.totalorder %s24, 0
      %p299 = por %p297, %p298
      %p300 = scmp.ne.s32.totalorder %s289, %s292
      %p301 = scmp.eq.s32.totalorder %s29, 1
      %p302 = por %p300, %p301
      %p303 = scmp.ne.s32.totalorder %s292, %s293
      %p304 = scmp.eq.s32.totalorder %s29, 0
      %p305 = por %p303, %p304
      %p306 = scmp.ne.s32.totalorder %s292, %s293
      %p307 = scmp.eq.s32.totalorder %s30, 1
      %p308 = por %p306, %p307
      %p310 = scmp.ne.s32.totalorder %s293, %s309
      %p311 = scmp.eq.s32.totalorder %s30, 0
      %p312 = por %p310, %p311
      %s313 = ssub.s32 %s24, %s31
      %p314 = scmp.eq.s32.totalorder %s313, 0
      %s316 = sadd.s32 %s315, 1
      %s317 = scalar_select %p314, %s315, %s316
      %p320 = pneg %p314
      %p321 = scmp.eq.s32.totalorder %s24, 1
      %p322 = por %p320, %p321
      %p323 = scmp.ne.s32.totalorder %s315, %s318
      %p324 = scmp.eq.s32.totalorder %s24, 0
      %p325 = por %p323, %p324
      %p326 = scmp.ne.s32.totalorder %s315, %s318
      %p327 = scmp.eq.s32.totalorder %s29, 1
      %p328 = por %p326, %p327
      %p329 = scmp.ne.s32.totalorder %s318, %s319
      %p330 = scmp.eq.s32.totalorder %s29, 0
      %p331 = por %p329, %p330
      %p332 = scmp.ne.s32.totalorder %s318, %s319
      %p333 = scmp.eq.s32.totalorder %s30, 1
      %p334 = por %p332, %p333
      %p336 = scmp.ne.s32.totalorder %s319, %s335
      %p337 = scmp.eq.s32.totalorder %s30, 0
      %p338 = por %p336, %p337
      %s339 = ssub.s32 %s24, %s31
      %p340 = scmp.eq.s32.totalorder %s339, 0
      %s342 = sadd.s32 %s341, 1
      %s343 = scalar_select %p340, %s341, %s342
      %p346 = pneg %p340
      %p347 = scmp.eq.s32.totalorder %s24, 1
      %p348 = por %p346, %p347
      %p349 = scmp.ne.s32.totalorder %s341, %s344
      %p350 = scmp.eq.s32.totalorder %s24, 0
      %p351 = por %p349, %p350
      %p352 = scmp.ne.s32.totalorder %s341, %s344
      %p353 = scmp.eq.s32.totalorder %s29, 1
      %p354 = por %p352, %p353
      %p355 = scmp.ne.s32.totalorder %s344, %s345
      %p356 = scmp.eq.s32.totalorder %s29, 0
      %p357 = por %p355, %p356
      %p358 = scmp.ne.s32.totalorder %s344, %s345
      %p359 = scmp.eq.s32.totalorder %s30, 1
      %p360 = por %p358, %p359
      %p362 = scmp.ne.s32.totalorder %s345, %s361
      %p363 = scmp.eq.s32.totalorder %s30, 0
      %p364 = por %p362, %p363
      %s365 = ssub.s32 %s24, %s31
      %p366 = scmp.eq.s32.totalorder %s365, 0
      %s368 = sadd.s32 %s367, 1
      %s369 = scalar_select %p366, %s367, %s368
      %p372 = pneg %p366
      %p373 = scmp.eq.s32.totalorder %s24, 1
      %p374 = por %p372, %p373
      %p375 = scmp.ne.s32.totalorder %s367, %s370
      %p376 = scmp.eq.s32.totalorder %s24, 0
      %p377 = por %p375, %p376
      %p378 = scmp.ne.s32.totalorder %s367, %s370
      %p379 = scmp.eq.s32.totalorder %s29, 1
      %p380 = por %p378, %p379
      %p381 = scmp.ne.s32.totalorder %s370, %s371
      %p382 = scmp.eq.s32.totalorder %s29, 0
      %p383 = por %p381, %p382
      %p384 = scmp.ne.s32.totalorder %s370, %s371
      %p385 = scmp.eq.s32.totalorder %s30, 1
      %p386 = por %p384, %p385
      %p388 = scmp.ne.s32.totalorder %s371, %s387
      %p389 = scmp.eq.s32.totalorder %s30, 0
      %p390 = por %p388, %p389
      %s391 = ssub.s32 %s24, %s31
      %p392 = scmp.eq.s32.totalorder %s391, 0
      %s394 = sadd.s32 %s393, 1
      %s395 = scalar_select %p392, %s393, %s394
      %p398 = pneg %p392
      %p399 = scmp.eq.s32.totalorder %s24, 1
      %p400 = por %p398, %p399
      %p401 = scmp.ne.s32.totalorder %s393, %s396
      %p402 = scmp.eq.s32.totalorder %s24, 0
      %p403 = por %p401, %p402
      %p404 = scmp.ne.s32.totalorder %s393, %s396
      %p405 = scmp.eq.s32.totalorder %s29, 1
      %p406 = por %p404, %p405
      %p407 = scmp.ne.s32.totalorder %s396, %s397
      %p408 = scmp.eq.s32.totalorder %s29, 0
      %p409 = por %p407, %p408
      %p410 = scmp.ne.s32.totalorder %s396, %s397
      %p411 = scmp.eq.s32.totalorder %s30, 1
      %p412 = por %p410, %p411
      %p414 = scmp.ne.s32.totalorder %s397, %s413
      %p415 = scmp.eq.s32.totalorder %s30, 0
      %p416 = por %p414, %p415
      %s417 = ssub.s32 %s24, %s31
      %p418 = scmp.eq.s32.totalorder %s417, 0
      %s420 = sadd.s32 %s419, 1
      %s421 = scalar_select %p418, %s419, %s420
      %p424 = pneg %p418
      %p425 = scmp.eq.s32.totalorder %s24, 1
      %p426 = por %p424, %p425
      %p427 = scmp.ne.s32.totalorder %s419, %s422
      %p428 = scmp.eq.s32.totalorder %s24, 0
      %p429 = por %p427, %p428
      %p430 = scmp.ne.s32.totalorder %s419, %s422
      %p431 = scmp.eq.s32.totalorder %s29, 1
      %p432 = por %p430, %p431
      %p433 = scmp.ne.s32.totalorder %s422, %s423
      %p434 = scmp.eq.s32.totalorder %s29, 0
      %p435 = por %p433, %p434
      %p436 = scmp.ne.s32.totalorder %s422, %s423
      %p437 = scmp.eq.s32.totalorder %s30, 1
      %p438 = por %p436, %p437
      %p440 = scmp.ne.s32.totalorder %s423, %s439
      %p441 = scmp.eq.s32.totalorder %s30, 0
      %p442 = por %p440, %p441
      %s443 = ssub.s32 %s24, %s31
      %p444 = scmp.eq.s32.totalorder %s443, 0
      %s446 = sadd.s32 %s445, 1
      %s447 = scalar_select %p444, %s445, %s446
      %p450 = pneg %p444
      %p451 = scmp.eq.s32.totalorder %s24, 1
      %p452 = por %p450, %p451
      %p453 = scmp.ne.s32.totalorder %s445, %s448
      %p454 = scmp.eq.s32.totalorder %s24, 0
      %p455 = por %p453, %p454
      %p456 = scmp.ne.s32.totalorder %s445, %s448
      %p457 = scmp.eq.s32.totalorder %s29, 1
      %p458 = por %p456, %p457
      %p459 = scmp.ne.s32.totalorder %s448, %s449
      %p460 = scmp.eq.s32.totalorder %s29, 0
      %p461 = por %p459, %p460
      %p462 = scmp.ne.s32.totalorder %s448, %s449
      %p463 = scmp.eq.s32.totalorder %s30, 1
      %p464 = por %p462, %p463
      %p466 = scmp.ne.s32.totalorder %s449, %s465
      %p467 = scmp.eq.s32.totalorder %s30, 0
      %p468 = por %p466, %p467
      %s470 = sadd.s32 %s469, 1
      %p473 = scmp.eq.s32.totalorder %s24, 1
      %p474 = scmp.ne.s32.totalorder %s469, %s471
      %p475 = scmp.eq.s32.totalorder %s24, 0
      %p476 = por %p474, %p475
      %p477 = scmp.ne.s32.totalorder %s469, %s471
      %p478 = scmp.eq.s32.totalorder %s29, 1
      %p479 = por %p477, %p478
      %p480 = scmp.ne.s32.totalorder %s471, %s472
      %p481 = scmp.eq.s32.totalorder %s29, 0
      %p482 = por %p480, %p481
      %p483 = scmp.ne.s32.totalorder %s471, %s472
      %p484 = scmp.eq.s32.totalorder %s30, 1
      %p485 = por %p483, %p484
      %p487 = scmp.ne.s32.totalorder %s472, %s486
      %p488 = scmp.eq.s32.totalorder %s30, 0
      %p489 = por %p487, %p488
      %p490 = scmp.le.s32.totalorder 1, %s24
      %p491 = scmp.lt.s32.totalorder %s24, 3
      %p492 = pnand %p490, %p491
      %p493 = pneg %p492
      // Predicated region
      $region9: #{tpu_custom_call.1} parent=5 // pred_check
        _
      $region10: #{tpu_custom_call.1} parent=5 // pred_check_branch
        %495 = sbr.rel (%p492) target = $region12
      $region11: #{tpu_custom_call.1} parent=5 // pred_region
        %s496 = ssub.s32 %s24, 1
        // Predicated region
        $region13: #{tpu_custom_call.1} parent=11 // pred_check
          %p497 = pneg %p45
        $region14: #{tpu_custom_call.1} parent=11 // pred_check_branch
          %499 = sbr.rel (%p497) target = $region16
        $region15: #{tpu_custom_call.1} parent=11 // pred_region
          _
        $region16: #{tpu_custom_call.1} parent=11 // pred_fallthru
          _
      $region12: #{tpu_custom_call.1} parent=5 // pred_fallthru
        _
      %p500 = scmp.lt.s32.totalorder %s24, 2
      // Predicated region
      $region17: #{tpu_custom_call.1} parent=5 // pred_check
        %p501 = pneg %p500
      $region18: #{tpu_custom_call.1} parent=5 // pred_check_branch
        %503 = sbr.rel (%p501) target = $region20
      $region19: #{tpu_custom_call.1} parent=5 // pred_region
        // Predicated region
        $region21: #{tpu_custom_call.1} parent=19 // pred_check
          %p504 = pneg %p65
        $region22: #{tpu_custom_call.1} parent=19 // pred_check_branch
          %506 = sbr.rel (%p504) target = $region24
        $region23: #{tpu_custom_call.1} parent=19 // pred_region
          %p507 = scmp.lt.s32.totalorder %s24, 1
          %s508 = scalar_select %p507, %s24, 1
          %s509 = scalar_lea.vmem %s1, %s508
        $region24: #{tpu_custom_call.1} parent=19 // pred_fallthru
          _
        // Predicated region
        $region25: #{tpu_custom_call.1} parent=19 // pred_check
          %p510 = pneg %p91
        $region26: #{tpu_custom_call.1} parent=19 // pred_check_branch
          %512 = sbr.rel (%p510) target = $region28
        $region27: #{tpu_custom_call.1} parent=19 // pred_region
          %p513 = scmp.lt.s32.totalorder %s24, 1
          %s514 = scalar_select %p513, %s24, 1
          %s515 = scalar_lea.vmem %s2, %s514
        $region28: #{tpu_custom_call.1} parent=19 // pred_fallthru
          _
        // Predicated region
        $region29: #{tpu_custom_call.1} parent=19 // pred_check
          %p516 = pneg %p117
        $region30: #{tpu_custom_call.1} parent=19 // pred_check_branch
          %518 = sbr.rel (%p516) target = $region32
        $region31: #{tpu_custom_call.1} parent=19 // pred_region
          %p519 = scmp.lt.s32.totalorder %s24, 1
          %s520 = scalar_select %p519, %s24, 1
          %s521 = smul.addr %s520, 16
          %s522 = smul.addr %s521, 4
          %s523 = scalar_lea.vmem %s3, %s522
        $region32: #{tpu_custom_call.1} parent=19 // pred_fallthru
          _
        // Predicated region
        $region33: #{tpu_custom_call.1} parent=19 // pred_check
          %p524 = pneg %p143
        $region34: #{tpu_custom_call.1} parent=19 // pred_check_branch
          %526 = sbr.rel (%p524) target = $region36
        $region35: #{tpu_custom_call.1} parent=19 // pred_region
          %p527 = scmp.lt.s32.totalorder %s24, 1
          %s528 = scalar_select %p527, %s24, 1
          %s529 = smul.addr %s528, 16
          %s530 = smul.addr %s529, 4
          %s531 = scalar_lea.vmem %s4, %s530
        $region36: #{tpu_custom_call.1} parent=19 // pred_fallthru
          _
        // Predicated region
        $region37: #{tpu_custom_call.1} parent=19 // pred_check
          %p532 = pneg %p169
        $region38: #{tpu_custom_call.1} parent=19 // pred_check_branch
          %534 = sbr.rel (%p532) target = $region40
        $region39: #{tpu_custom_call.1} parent=19 // pred_region
          %p535 = scmp.lt.s32.totalorder %s24, 1
          %s536 = scalar_select %p535, %s24, 1
          %s537 = smul.addr %s536, 16
          %s538 = smul.addr %s537, 4
          %s539 = scalar_lea.vmem %s5, %s538
        $region40: #{tpu_custom_call.1} parent=19 // pred_fallthru
          _
        // Predicated region
        $region41: #{tpu_custom_call.1} parent=19 // pred_check
          %p540 = pneg %p195
        $region42: #{tpu_custom_call.1} parent=19 // pred_check_branch
          %542 = sbr.rel (%p540) target = $region44
        $region43: #{tpu_custom_call.1} parent=19 // pred_region
          %p543 = scmp.lt.s32.totalorder %s24, 1
          %s544 = scalar_select %p543, %s24, 1
          %s545 = smul.addr %s544, 4
          %s546 = scalar_lea.vmem %s6, %s545
        $region44: #{tpu_custom_call.1} parent=19 // pred_fallthru
          _
        // Predicated region
        $region45: #{tpu_custom_call.1} parent=19 // pred_check
          %p547 = pneg %p221
        $region46: #{tpu_custom_call.1} parent=19 // pred_check_branch
          %549 = sbr.rel (%p547) target = $region48
        $region47: #{tpu_custom_call.1} parent=19 // pred_region
          %p550 = scmp.lt.s32.totalorder %s24, 1
          %s551 = scalar_select %p550, %s24, 1
          %s552 = smul.addr %s551, 4
          %s553 = scalar_lea.vmem %s7, %s552
        $region48: #{tpu_custom_call.1} parent=19 // pred_fallthru
          _
        // Predicated region
        $region49: #{tpu_custom_call.1} parent=19 // pred_check
          %p554 = pneg %p247
        $region50: #{tpu_custom_call.1} parent=19 // pred_check_branch
          %556 = sbr.rel (%p554) target = $region52
        $region51: #{tpu_custom_call.1} parent=19 // pred_region
          %p557 = scmp.lt.s32.totalorder %s24, 1
          %s558 = scalar_select %p557, %s24, 1
          %s559 = smul.addr %s558, 4
          %s560 = scalar_lea.vmem %s8, %s559
        $region52: #{tpu_custom_call.1} parent=19 // pred_fallthru
          _
        // Predicated region
        $region53: #{tpu_custom_call.1} parent=19 // pred_check
          %p561 = pneg %p273
        $region54: #{tpu_custom_call.1} parent=19 // pred_check_branch
          %563 = sbr.rel (%p561) target = $region56
        $region55: #{tpu_custom_call.1} parent=19 // pred_region
          %p564 = scmp.lt.s32.totalorder %s24, 1
          %s565 = scalar_select %p564, %s24, 1
          %s566 = smul.addr %s565, 4
          %s567 = smul.addr %s566, 4
          %s568 = scalar_lea.vmem %s9, %s567
        $region56: #{tpu_custom_call.1} parent=19 // pred_fallthru
          _
        // Predicated region
        $region57: #{tpu_custom_call.1} parent=19 // pred_check
          %p569 = pneg %p299
        $region58: #{tpu_custom_call.1} parent=19 // pred_check_branch
          %571 = sbr.rel (%p569) target = $region60
        $region59: #{tpu_custom_call.1} parent=19 // pred_region
          %p572 = scmp.lt.s32.totalorder %s24, 1
          %s573 = scalar_select %p572, %s24, 1
          %s574 = scalar_lea.vmem %s10, %s573
        $region60: #{tpu_custom_call.1} parent=19 // pred_fallthru
          _
        // Predicated region
        $region61: #{tpu_custom_call.1} parent=19 // pred_check
          %p575 = pneg %p325
        $region62: #{tpu_custom_call.1} parent=19 // pred_check_branch
          %577 = sbr.rel (%p575) target = $region64
        $region63: #{tpu_custom_call.1} parent=19 // pred_region
          %p578 = scmp.lt.s32.totalorder %s24, 1
          %s579 = scalar_select %p578, %s24, 1
          %s580 = scalar_lea.vmem %s11, %s579
        $region64: #{tpu_custom_call.1} parent=19 // pred_fallthru
          _
        // Predicated region
        $region65: #{tpu_custom_call.1} parent=19 // pred_check
          %p581 = pneg %p351
        $region66: #{tpu_custom_call.1} parent=19 // pred_check_branch
          %583 = sbr.rel (%p581) target = $region68
        $region67: #{tpu_custom_call.1} parent=19 // pred_region
          %p584 = scmp.lt.s32.totalorder %s24, 1
          %s585 = scalar_select %p584, %s24, 1
          %s586 = scalar_lea.vmem %s12, %s585
        $region68: #{tpu_custom_call.1} parent=19 // pred_fallthru
          _
        // Predicated region
        $region69: #{tpu_custom_call.1} parent=19 // pred_check
          %p587 = pneg %p377
        $region70: #{tpu_custom_call.1} parent=19 // pred_check_branch
          %589 = sbr.rel (%p587) target = $region72
        $region71: #{tpu_custom_call.1} parent=19 // pred_region
          %p590 = scmp.lt.s32.totalorder %s24, 1
          %s591 = scalar_select %p590, %s24, 1
          %s592 = smul.addr %s591, 4
          %s593 = smul.addr %s592, 4
          %s594 = scalar_lea.vmem %s13, %s593
        $region72: #{tpu_custom_call.1} parent=19 // pred_fallthru
          _
        // Predicated region
        $region73: #{tpu_custom_call.1} parent=19 // pred_check
          %p595 = pneg %p403
        $region74: #{tpu_custom_call.1} parent=19 // pred_check_branch
          %597 = sbr.rel (%p595) target = $region76
        $region75: #{tpu_custom_call.1} parent=19 // pred_region
          %p598 = scmp.lt.s32.totalorder %s24, 1
          %s599 = scalar_select %p598, %s24, 1
          %s600 = scalar_lea.vmem %s14, %s599
        $region76: #{tpu_custom_call.1} parent=19 // pred_fallthru
          _
        // Predicated region
        $region77: #{tpu_custom_call.1} parent=19 // pred_check
          %p601 = pneg %p429
        $region78: #{tpu_custom_call.1} parent=19 // pred_check_branch
          %603 = sbr.rel (%p601) target = $region80
        $region79: #{tpu_custom_call.1} parent=19 // pred_region
          %p604 = scmp.lt.s32.totalorder %s24, 1
          %s605 = scalar_select %p604, %s24, 1
          %s606 = smul.addr %s605, 16
          %s607 = smul.addr %s606, 4
          %s608 = scalar_lea.vmem %s15, %s607
        $region80: #{tpu_custom_call.1} parent=19 // pred_fallthru
          _
        // Predicated region
        $region81: #{tpu_custom_call.1} parent=19 // pred_check
          %p609 = pneg %p455
        $region82: #{tpu_custom_call.1} parent=19 // pred_check_branch
          %611 = sbr.rel (%p609) target = $region84
        $region83: #{tpu_custom_call.1} parent=19 // pred_region
          %p612 = scmp.lt.s32.totalorder %s24, 1
          %s613 = scalar_select %p612, %s24, 1
          %s614 = scalar_lea.vmem %s16, %s613
        $region84: #{tpu_custom_call.1} parent=19 // pred_fallthru
          _
      $region20: #{tpu_custom_call.1} parent=5 // pred_fallthru
        _
      %p615 = scmp.le.s32.totalorder 1, %s24
      %p616 = scmp.lt.s32.totalorder %s24, 3
      %p617 = pnand %p615, %p616
      %p618 = pneg %p617
      // Predicated region
      $region85: #{tpu_custom_call.1} parent=5 // pred_check
        _
      $region86: #{tpu_custom_call.1} parent=5 // pred_check_branch
        %620 = sbr.rel (%p617) target = $region88
      $region87: #{tpu_custom_call.1} parent=5 // pred_region
        %s621 = ssub.s32 %s24, 1
        %p622 = pneg %p45
        %p623 = pneg %p42
        %p624 = scmp.lt.s32.totalorder %s29, 1
        %s625 = scalar_select %p624, %s29, 1
        %s626 = scalar_lea.vmem %s1, %s625
        %p627 = pneg %p71
        %p628 = pneg %p68
        %p629 = scmp.lt.s32.totalorder %s29, 1
        %s630 = scalar_select %p629, %s29, 1
        %s631 = scalar_lea.vmem %s2, %s630
        %p632 = pneg %p97
        %p633 = pneg %p94
        %p634 = scmp.lt.s32.totalorder %s29, 1
        %s635 = scalar_select %p634, %s29, 1
        %s636 = smul.addr %s635, 16
        %s637 = smul.addr %s636, 4
        %s638 = scalar_lea.vmem %s3, %s637
        %p639 = pneg %p123
        %p640 = pneg %p120
        %p641 = scmp.lt.s32.totalorder %s29, 1
        %s642 = scalar_select %p641, %s29, 1
        %s643 = smul.addr %s642, 16
        %s644 = smul.addr %s643, 4
        %s645 = scalar_lea.vmem %s4, %s644
        %p646 = pneg %p149
        %p647 = pneg %p146
        %p648 = scmp.lt.s32.totalorder %s29, 1
        %s649 = scalar_select %p648, %s29, 1
        %s650 = smul.addr %s649, 16
        %s651 = smul.addr %s650, 4
        %s652 = scalar_lea.vmem %s5, %s651
        %p653 = pneg %p175
        %p654 = pneg %p172
        %p655 = scmp.lt.s32.totalorder %s29, 1
        %s656 = scalar_select %p655, %s29, 1
        %s657 = smul.addr %s656, 4
        %s658 = scalar_lea.vmem %s6, %s657
        %p659 = pneg %p201
        %p660 = pneg %p198
        %p661 = scmp.lt.s32.totalorder %s29, 1
        %s662 = scalar_select %p661, %s29, 1
        %s663 = smul.addr %s662, 4
        %s664 = scalar_lea.vmem %s7, %s663
        %p665 = pneg %p227
        %p666 = pneg %p224
        %p667 = scmp.lt.s32.totalorder %s29, 1
        %s668 = scalar_select %p667, %s29, 1
        %s669 = smul.addr %s668, 4
        %s670 = scalar_lea.vmem %s8, %s669
        %p671 = pneg %p253
        %p672 = pneg %p250
        %p673 = scmp.lt.s32.totalorder %s29, 1
        %s674 = scalar_select %p673, %s29, 1
        %s675 = smul.addr %s674, 4
        %s676 = smul.addr %s675, 4
        %s677 = scalar_lea.vmem %s9, %s676
        %p678 = pneg %p279
        %p679 = pneg %p276
        %p680 = scmp.lt.s32.totalorder %s29, 1
        %s681 = scalar_select %p680, %s29, 1
        %s682 = scalar_lea.vmem %s10, %s681
        %p683 = pneg %p305
        %p684 = pneg %p302
        %p685 = scmp.lt.s32.totalorder %s29, 1
        %s686 = scalar_select %p685, %s29, 1
        %s687 = scalar_lea.vmem %s11, %s686
        %p688 = pneg %p331
        %p689 = pneg %p328
        %p690 = scmp.lt.s32.totalorder %s29, 1
        %s691 = scalar_select %p690, %s29, 1
        %s692 = scalar_lea.vmem %s12, %s691
        %p693 = pneg %p357
        %p694 = pneg %p354
        %p695 = scmp.lt.s32.totalorder %s29, 1
        %s696 = scalar_select %p695, %s29, 1
        %s697 = smul.addr %s696, 4
        %s698 = smul.addr %s697, 4
        %s699 = scalar_lea.vmem %s13, %s698
        %p700 = pneg %p383
        %p701 = pneg %p380
        %p702 = scmp.lt.s32.totalorder %s29, 1
        %s703 = scalar_select %p702, %s29, 1
        %s704 = scalar_lea.vmem %s14, %s703
        %p705 = pneg %p409
        %p706 = pneg %p406
        %p707 = scmp.lt.s32.totalorder %s29, 1
        %s708 = scalar_select %p707, %s29, 1
        %s709 = smul.addr %s708, 16
        %s710 = smul.addr %s709, 4
        %s711 = scalar_lea.vmem %s15, %s710
        %p712 = pneg %p435
        %p713 = pneg %p432
        %p714 = scmp.lt.s32.totalorder %s29, 1
        %s715 = scalar_select %p714, %s29, 1
        %s716 = scalar_lea.vmem %s16, %s715
        %p717 = pneg %p461
        %p718 = pneg %p458
        %p719 = pneg %p482
        %p720 = pneg %p479
        %p721 = scmp.lt.s32.totalorder %s29, 1
        %s722 = scalar_select %p721, %s29, 1
        %s723 = scalar_lea.vmem %s1, %s722
        %p724 = scmp.lt.s32.totalorder %s29, 1
        %s725 = scalar_select %p724, %s29, 1
        %s726 = scalar_lea.vmem %s2, %s725
        %p727 = scmp.lt.s32.totalorder %s29, 1
        %s728 = scalar_select %p727, %s29, 1
        %s729 = smul.addr %s728, 16
        %s730 = smul.addr %s729, 4
        %s731 = scalar_lea.vmem %s3, %s730
        %p732 = scmp.lt.s32.totalorder %s29, 1
        %s733 = scalar_select %p732, %s29, 1
        %s734 = smul.addr %s733, 16
        %s735 = smul.addr %s734, 4
        %s736 = scalar_lea.vmem %s4, %s735
        %p737 = scmp.lt.s32.totalorder %s29, 1
        %s738 = scalar_select %p737, %s29, 1
        %s739 = smul.addr %s738, 16
        %s740 = smul.addr %s739, 4
        %s741 = scalar_lea.vmem %s5, %s740
        %p742 = scmp.lt.s32.totalorder %s29, 1
        %s743 = scalar_select %p742, %s29, 1
        %s744 = smul.addr %s743, 4
        %s745 = scalar_lea.vmem %s6, %s744
        %p746 = scmp.lt.s32.totalorder %s29, 1
        %s747 = scalar_select %p746, %s29, 1
        %s748 = smul.addr %s747, 4
        %s749 = scalar_lea.vmem %s7, %s748
        %p750 = scmp.lt.s32.totalorder %s29, 1
        %s751 = scalar_select %p750, %s29, 1
        %s752 = smul.addr %s751, 4
        %s753 = scalar_lea.vmem %s8, %s752
        %p754 = scmp.lt.s32.totalorder %s29, 1
        %s755 = scalar_select %p754, %s29, 1
        %s756 = smul.addr %s755, 4
        %s757 = smul.addr %s756, 4
        %s758 = scalar_lea.vmem %s9, %s757
        %p759 = scmp.lt.s32.totalorder %s29, 1
        %s760 = scalar_select %p759, %s29, 1
        %s761 = scalar_lea.vmem %s10, %s760
        %p762 = scmp.lt.s32.totalorder %s29, 1
        %s763 = scalar_select %p762, %s29, 1
        %s764 = scalar_lea.vmem %s11, %s763
        %p765 = scmp.lt.s32.totalorder %s29, 1
        %s766 = scalar_select %p765, %s29, 1
        %s767 = scalar_lea.vmem %s12, %s766
        %p768 = scmp.lt.s32.totalorder %s29, 1
        %s769 = scalar_select %p768, %s29, 1
        %s770 = smul.addr %s769, 4
        %s771 = smul.addr %s770, 4
        %s772 = scalar_lea.vmem %s13, %s771
        %p773 = scmp.lt.s32.totalorder %s29, 1
        %s774 = scalar_select %p773, %s29, 1
        %s775 = scalar_lea.vmem %s14, %s774
        %p776 = scmp.lt.s32.totalorder %s29, 1
        %s777 = scalar_select %p776, %s29, 1
        %s778 = smul.addr %s777, 16
        %s779 = smul.addr %s778, 4
        %s780 = scalar_lea.vmem %s15, %s779
        %p781 = scmp.lt.s32.totalorder %s29, 1
        %s782 = scalar_select %p781, %s29, 1
        %s783 = scalar_lea.vmem %s16, %s782
        %p785 = scmp.eq.s32.totalorder %s29, 0
        // Predicated region
        $region89: #{tpu_custom_call.1} parent=87 // pred_check
          %p786 = pneg %p785
        $region90: #{tpu_custom_call.1} parent=87 // pred_check_branch
          %788 = sbr.rel (%p786) target = $region92
        $region91: #{tpu_custom_call.1} parent=87 // pred_region
          %v789 = vld [vmem:[%s0] sm:$0xff]
          %v790 = vld [vmem:[%s0 + $0x8] sm:$0xff]
          %vm791 = vcmask 261120
          %792 = vst.msk [vmem:[#allocation2] sm:$0xff] %vm791, %v789
          %793 = vst.msk [vmem:[#allocation2 + $0x8] sm:$0xff] %vm791, %v790
        $region92: #{tpu_custom_call.1} parent=87 // pred_fallthru
          _
        %v794 = vld [vmem:[#allocation2] sm:$0xff]
        %v795 = vld [vmem:[#allocation2 + $0x8] sm:$0xff]
        %v796 = vld [vmem:[%s723] sm:$0x1]
        %v797 = vld [vmem:[%s726] sm:$0x1]
        %vm798 = vcmask 261120
        %v799 = vsel %vm798, %v794, 0.0
        %800 = vadd.xlane.f32.xlu0 %v799
        %v801 = vpop.xlane.xlu0 %800
        %v802 = vsel %vm798, %v795, 0.0
        %803 = vadd.xlane.f32.xlu0 %v802
        %v804 = vpop.xlane.xlu0 %803
        %v805 = vrcp.pop 32.0
        %v806 = vmul.f32 32.0, %v805
        %v807 = vsub.f32 1.0, %v806
        %v808 = vmul.f32 %v805, %v807
        %v809 = vadd.f32 %v805, %v808
        %vm810 = vweird.f32 %v805
        %v811 = vsel %vm810, %v805, %v809
        %v812 = vmul.f32 %v801, %v811
        %v813 = vmul.f32 %v804, %v811
        %v814 = vsub.f32 %v794, %v812
        %v815 = vsub.f32 %v795, %v813
        %v816 = vmul.f32 %v814, %v814
        %v817 = vmul.f32 %v815, %v815
        %v818 = vsel %vm798, %v816, 0.0
        %819 = vadd.xlane.f32.xlu0 %v818
        %v820 = vpop.xlane.xlu0 %819
        %v821 = vsel %vm798, %v817, 0.0
        %822 = vadd.xlane.f32.xlu0 %v821
        %v823 = vpop.xlane.xlu0 %822
        %v824 = vmul.f32 %v820, %v811
        %v825 = vmul.f32 %v823, %v811
        %v826 = vadd.f32 %v824, 1e-05
        %v827 = vadd.f32 %v825, 1e-05
        %v828 = vrsqrt.pop %v826
        %v829 = vmul.f32 %v828, %v826
        %v830 = vmul.f32 %v829, %v828
        %v831 = vmul.f32 0.5, %v830
        %v832 = vsub.f32 1.5, %v831
        %v833 = vmul.f32 %v828, %v832
        %vm834 = vweird.f32 %v826
        %vm835 = vweird.f32 %v828
        %vm836 = vmor %vm834, %vm835
        %v837 = vsel %vm836, %v828, %v833
        %v838 = vrsqrt.pop %v827
        %v839 = vmul.f32 %v838, %v827
        %v840 = vmul.f32 %v839, %v838
        %v841 = vmul.f32 0.5, %v840
        %v842 = vsub.f32 1.5, %v841
        %v843 = vmul.f32 %v838, %v842
        %vm844 = vweird.f32 %v827
        %vm845 = vweird.f32 %v838
        %vm846 = vmor %vm844, %vm845
        %v847 = vsel %vm846, %v838, %v843
        %v848 = vmul.f32 %v814, %v837
        %v849 = vmul.f32 %v815, %v847
        %v851 = vperm.slane %v796, 0
        %v853 = vmul.f32 %v848, %v851
        %v854 = vmul.f32 %v849, %v851
        %v856 = vperm.slane %v797, 0
        %v858 = vadd.f32 %v853, %v856
        %v859 = vadd.f32 %v854, %v856
        %v860 = vpack.c.bf16 %v859, %v858
        %v861 = vlaneseq
        %v862 = vshrl.u32 %v861, 7
        %v863 = vlaneseq
        %v864 = vand.u32 %v863, 127
        %vm865 = vcmp.ge.s32.totalorder %v862, %v864
        %v866 = vsel %vm865, 0.0, -1e+30
        %v867 = vld [vmem:[%s731] sm:$0xf]
        %v868 = vld [vmem:[%s731 + $0x4] sm:$0xf]
        %v869 = vld [vmem:[%s731 + $0x8] sm:$0xf]
        %v870 = vld [vmem:[%s731 + $0xc] sm:$0xf]
        %v871 = vld [vmem:[%s745] sm:$0x1]
        %v873 = vperm.slane %v871, 0
        %v879 = vunpack.c.l.b16 %v867
        %v880 = vunpack.c.l.b16 %v868
        %v881 = vunpack.c.l.b16 %v869
        %v882 = vunpack.c.l.b16 %v870
        %v883 = vpack.c.b16 %v880, %v879
        %v884 = vpack.c.b16 %v882, %v881
        %v888 = vsel %vm798, %v860, 0
        %890 = vmatpush.bf16.msra.mxu0 0
        %891 = vmatpush.bf16.msra.mxu0 0
        %892 = vmatpush.bf16.msra.mxu0 0
        %893 = vmatpush.bf16.msra.mxu0 0
        %894 = vmatpush.bf16.msra.mxu0 0
        %895 = vmatpush.bf16.msra.mxu0 0
        %896 = vmatpush.bf16.msra.mxu0 %v884
        %897 = vmatpush.bf16.msra.mxu0 %v883
        %898 = vmatmul.bf16.gmra.mxu0 %v888
        %v899 = vpop.f32.mrf.mxu0
        %v900 = vadd.f32 %v873, %v899
        %v901 = vpop.f32.mrf.mxu0
        %v902 = vadd.f32 %v873, %v901
        %903 = vdwg.mxu0
        %v904 = vld [vmem:[%s736] sm:$0xf]
        %v905 = vld [vmem:[%s736 + $0x4] sm:$0xf]
        %v906 = vld [vmem:[%s736 + $0x8] sm:$0xf]
        %v907 = vld [vmem:[%s736 + $0xc] sm:$0xf]
        %v908 = vld [vmem:[%s749] sm:$0x1]
        %v910 = vperm.slane %v908, 0
        %v916 = vunpack.c.l.b16 %v904
        %v917 = vunpack.c.l.b16 %v905
        %v918 = vunpack.c.l.b16 %v906
        %v919 = vunpack.c.l.b16 %v907
        %v920 = vpack.c.b16 %v917, %v916
        %v921 = vpack.c.b16 %v919, %v918
        %924 = vmatpush.bf16.msra.mxu0 0
        %925 = vmatpush.bf16.msra.mxu0 0
        %926 = vmatpush.bf16.msra.mxu0 0
        %927 = vmatpush.bf16.msra.mxu0 0
        %928 = vmatpush.bf16.msra.mxu0 0
        %929 = vmatpush.bf16.msra.mxu0 0
        %930 = vmatpush.bf16.msra.mxu0 %v921
        %931 = vmatpush.bf16.msra.mxu0 %v920
        %932 = vmatmul.bf16.gmra.mxu0 %v888
        %v933 = vpop.f32.mrf.mxu0
        %v934 = vadd.f32 %v910, %v933
        %v935 = vpop.f32.mrf.mxu0
        %v936 = vadd.f32 %v910, %v935
        %937 = vdwg.mxu0
        %v938 = vld [vmem:[%s741] sm:$0xf]
        %v939 = vld [vmem:[%s741 + $0x4] sm:$0xf]
        %v940 = vld [vmem:[%s741 + $0x8] sm:$0xf]
        %v941 = vld [vmem:[%s741 + $0xc] sm:$0xf]
        %v942 = vld [vmem:[%s753] sm:$0x1]
        %v944 = vperm.slane %v942, 0
        %v950 = vunpack.c.l.b16 %v938
        %v951 = vunpack.c.l.b16 %v939
        %v952 = vunpack.c.l.b16 %v940
        %v953 = vunpack.c.l.b16 %v941
        %v954 = vpack.c.b16 %v951, %v950
        %v955 = vpack.c.b16 %v953, %v952
        %958 = vmatpush.bf16.msra.mxu0 0
        %959 = vmatpush.bf16.msra.mxu0 0
        %960 = vmatpush.bf16.msra.mxu0 0
        %961 = vmatpush.bf16.msra.mxu0 0
        %962 = vmatpush.bf16.msra.mxu0 0
        %963 = vmatpush.bf16.msra.mxu0 0
        %964 = vmatpush.bf16.msra.mxu0 %v955
        %965 = vmatpush.bf16.msra.mxu0 %v954
        %966 = vmatmul.bf16.gmra.mxu0 %v888
        %v967 = vpop.f32.mrf.mxu0
        %v968 = vadd.f32 %v944, %v967
        %v969 = vpop.f32.mrf.mxu0
        %v970 = vadd.f32 %v944, %v969
        %971 = vdwg.mxu0
        %v972 = vpack.c.bf16 %v900, %v900
        %v973 = vpack.c.bf16 %v902, %v902
        %v974 = vpack.c.bf16 %v934, %v934
        %v975 = vpack.c.bf16 %v936, %v936
        %v976 = vpack.c.bf16 %v968, %v968
        %v977 = vpack.c.bf16 %v970, %v970
        %vm978 = vcmask 64512
        %v980 = vsel %vm978, %v972, 0
        %v983 = vsel %vm978, %v974, 0
        %985 = vmatpush.bf16.xpose.msra.mxu0 0
        %986 = vmatpush.bf16.xpose.msra.mxu0 0
        %987 = vmatpush.bf16.xpose.msra.mxu0 0
        %988 = vmatpush.bf16.xpose.msra.mxu0 0
        %989 = vmatpush.bf16.xpose.msra.mxu0 0
        %990 = vmatpush.bf16.xpose.msra.mxu0 0
        %991 = vmatpush.bf16.xpose.msra.mxu0 0
        %992 = vmatpush.bf16.xpose.msra.mxu0 %v983
        %993 = vmatmul.bf16.gmra.mxu0 %v980
        %v994 = vpop.f32.mrf.mxu0
        %v995 = vadd.f32 0.0, %v994
        %v996 = vpop.f32.mrf.mxu0
        %997 = vdwg.mxu0
        %v999 = vsel %vm978, %v973, 0
        %v1002 = vsel %vm978, %v975, 0
        %1004 = vmatpush.bf16.xpose.msra.mxu0 0
        %1005 = vmatpush.bf16.xpose.msra.mxu0 0
        %1006 = vmatpush.bf16.xpose.msra.mxu0 0
        %1007 = vmatpush.bf16.xpose.msra.mxu0 0
        %1008 = vmatpush.bf16.xpose.msra.mxu0 0
        %1009 = vmatpush.bf16.xpose.msra.mxu0 0
        %1010 = vmatpush.bf16.xpose.msra.mxu0 0
        %1011 = vmatpush.bf16.xpose.msra.mxu0 %v1002
        %1012 = vmatmul.bf16.gmra.mxu0 %v999
        %v1013 = vpop.f32.mrf.mxu0
        %v1014 = vadd.f32 0.0, %v1013
        %v1015 = vpop.f32.mrf.mxu0
        %1016 = vdwg.mxu0
        %v1017 = vmul.f32 %v995, 0.35355338
        %v1018 = vmul.f32 %v1014, 0.35355338
        %v1019 = vadd.f32 %v1017, %v866
        %v1020 = vadd.f32 %v1018, %v866
        %v1021 = vsel %vm978, %v1019, -inf
        %1022 = vmax.xlane.f32.xlu0 %v1021
        %v1023 = vpop.xlane.xlu0 %1022
        %v1024 = vsel %vm978, %v1020, -inf
        %1025 = vmax.xlane.f32.xlu0 %v1024
        %v1026 = vpop.xlane.xlu0 %1025
        %v1027 = vsub.f32 %v1019, %v1023
        %v1028 = vsub.f32 %v1020, %v1026
        %v1029 = vmul.f32 %v1027, 1.442695
        %v1030 = vpow.pop %v1029
        %v1031 = vmul.f32 %v1028, 1.442695
        %v1032 = vpow.pop %v1031
        %v1033 = vsel %vm978, %v1030, 0.0
        %1034 = vadd.xlane.f32.xlu0 %v1033
        %v1035 = vpop.xlane.xlu0 %1034
        %v1036 = vsel %vm978, %v1032, 0.0
        %1037 = vadd.xlane.f32.xlu0 %v1036
        %v1038 = vpop.xlane.xlu0 %1037
        %v1039 = vrcp.pop %v1035
        %v1040 = vrcp.pop %v1038
        %v1041 = vmul.f32 %v1030, %v1039
        %v1042 = vmul.f32 %v1032, %v1040
        %v1043 = vpack.c.bf16 %v1041, %v1041
        %v1044 = vpack.c.bf16 %v1042, %v1042
        %v1046 = vsel %vm978, %v1043, 0
        %vm1048 = vcmask 1043456
        %v1050 = vsel %vm1048, %v976, 0
        %1052 = vmatpush.bf16.msra.mxu0 0
        %1053 = vmatpush.bf16.msra.mxu0 0
        %1054 = vmatpush.bf16.msra.mxu0 0
        %1055 = vmatpush.bf16.msra.mxu0 0
        %1056 = vmatpush.bf16.msra.mxu0 0
        %1057 = vmatpush.bf16.msra.mxu0 0
        %1058 = vmatpush.bf16.msra.mxu0 0
        %1059 = vmatpush.bf16.msra.mxu0 %v1050
        %1060 = vmatmul.bf16.gmra.mxu0 %v1046
        %v1061 = vpop.f32.mrf.mxu0
        %v1062 = vadd.f32 0.0, %v1061
        %v1063 = vpop.f32.mrf.mxu0
        %1064 = vdwg.mxu0
        %v1066 = vsel %vm978, %v1044, 0
        %v1069 = vsel %vm1048, %v977, 0
        %1071 = vmatpush.bf16.msra.mxu0 0
        %1072 = vmatpush.bf16.msra.mxu0 0
        %1073 = vmatpush.bf16.msra.mxu0 0
        %1074 = vmatpush.bf16.msra.mxu0 0
        %1075 = vmatpush.bf16.msra.mxu0 0
        %1076 = vmatpush.bf16.msra.mxu0 0
        %1077 = vmatpush.bf16.msra.mxu0 0
        %1078 = vmatpush.bf16.msra.mxu0 %v1069
        %1079 = vmatmul.bf16.gmra.mxu0 %v1066
        %v1080 = vpop.f32.mrf.mxu0
        %v1081 = vadd.f32 0.0, %v1080
        %v1082 = vpop.f32.mrf.mxu0
        %1083 = vdwg.mxu0
        %v1084 = vpack.c.bf16 %v1081, %v1062
        %v1085 = vld [vmem:[%s758] sm:$0xf]
        %s1086 = scalar_lea.vmem %s731, 16
        %v1087 = vld [vmem:[%s1086] sm:$0xf]
        %v1088 = vld [vmem:[%s1086 + $0x4] sm:$0xf]
        %v1089 = vld [vmem:[%s1086 + $0x8] sm:$0xf]
        %v1090 = vld [vmem:[%s1086 + $0xc] sm:$0xf]
        %s1091 = scalar_lea.vmem %s745, 1
        %v1092 = vld [vmem:[%s1091] sm:$0x1]
        %v1094 = vperm.slane %v1092, 0
        %v1100 = vunpack.c.l.b16 %v1087
        %v1101 = vunpack.c.l.b16 %v1088
        %v1102 = vunpack.c.l.b16 %v1089
        %v1103 = vunpack.c.l.b16 %v1090
        %v1104 = vpack.c.b16 %v1101, %v1100
        %v1105 = vpack.c.b16 %v1103, %v1102
        %1108 = vmatpush.bf16.msra.mxu0 0
        %1109 = vmatpush.bf16.msra.mxu0 0
        %1110 = vmatpush.bf16.msra.mxu0 0
        %1111 = vmatpush.bf16.msra.mxu0 0
        %1112 = vmatpush.bf16.msra.mxu0 0
        %1113 = vmatpush.bf16.msra.mxu0 0
        %1114 = vmatpush.bf16.msra.mxu0 %v1105
        %1115 = vmatpush.bf16.msra.mxu0 %v1104
        %1116 = vmatmul.bf16.gmra.mxu0 %v888
        %v1117 = vpop.f32.mrf.mxu0
        %v1118 = vadd.f32 %v1094, %v1117
        %v1119 = vpop.f32.mrf.mxu0
        %v1120 = vadd.f32 %v1094, %v1119
        %1121 = vdwg.mxu0
        %s1122 = scalar_lea.vmem %s736, 16
        %v1123 = vld [vmem:[%s1122] sm:$0xf]
        %v1124 = vld [vmem:[%s1122 + $0x4] sm:$0xf]
        %v1125 = vld [vmem:[%s1122 + $0x8] sm:$0xf]
        %v1126 = vld [vmem:[%s1122 + $0xc] sm:$0xf]
        %s1127 = scalar_lea.vmem %s749, 1
        %v1128 = vld [vmem:[%s1127] sm:$0x1]
        %v1130 = vperm.slane %v1128, 0
        %v1136 = vunpack.c.l.b16 %v1123
        %v1137 = vunpack.c.l.b16 %v1124
        %v1138 = vunpack.c.l.b16 %v1125
        %v1139 = vunpack.c.l.b16 %v1126
        %v1140 = vpack.c.b16 %v1137, %v1136
        %v1141 = vpack.c.b16 %v1139, %v1138
        %1144 = vmatpush.bf16.msra.mxu0 0
        %1145 = vmatpush.bf16.msra.mxu0 0
        %1146 = vmatpush.bf16.msra.mxu0 0
        %1147 = vmatpush.bf16.msra.mxu0 0
        %1148 = vmatpush.bf16.msra.mxu0 0
        %1149 = vmatpush.bf16.msra.mxu0 0
        %1150 = vmatpush.bf16.msra.mxu0 %v1141
        %1151 = vmatpush.bf16.msra.mxu0 %v1140
        %1152 = vmatmul.bf16.gmra.mxu0 %v888
        %v1153 = vpop.f32.mrf.mxu0
        %v1154 = vadd.f32 %v1130, %v1153
        %v1155 = vpop.f32.mrf.mxu0
        %v1156 = vadd.f32 %v1130, %v1155
        %1157 = vdwg.mxu0
        %s1158 = scalar_lea.vmem %s741, 16
        %v1159 = vld [vmem:[%s1158] sm:$0xf]
        %v1160 = vld [vmem:[%s1158 + $0x4] sm:$0xf]
        %v1161 = vld [vmem:[%s1158 + $0x8] sm:$0xf]
        %v1162 = vld [vmem:[%s1158 + $0xc] sm:$0xf]
        %s1163 = scalar_lea.vmem %s753, 1
        %v1164 = vld [vmem:[%s1163] sm:$0x1]
        %v1166 = vperm.slane %v1164, 0
        %v1172 = vunpack.c.l.b16 %v1159
        %v1173 = vunpack.c.l.b16 %v1160
        %v1174 = vunpack.c.l.b16 %v1161
        %v1175 = vunpack.c.l.b16 %v1162
        %v1176 = vpack.c.b16 %v1173, %v1172
        %v1177 = vpack.c.b16 %v1175, %v1174
        %1180 = vmatpush.bf16.msra.mxu0 0
        %1181 = vmatpush.bf16.msra.mxu0 0
        %1182 = vmatpush.bf16.msra.mxu0 0
        %1183 = vmatpush.bf16.msra.mxu0 0
        %1184 = vmatpush.bf16.msra.mxu0 0
        %1185 = vmatpush.bf16.msra.mxu0 0
        %1186 = vmatpush.bf16.msra.mxu0 %v1177
        %1187 = vmatpush.bf16.msra.mxu0 %v1176
        %1188 = vmatmul.bf16.gmra.mxu0 %v888
        %v1189 = vpop.f32.mrf.mxu0
        %v1190 = vadd.f32 %v1166, %v1189
        %v1191 = vpop.f32.mrf.mxu0
        %v1192 = vadd.f32 %v1166, %v1191
        %1193 = vdwg.mxu0
        %v1194 = vpack.c.bf16 %v1118, %v1118
        %v1195 = vpack.c.bf16 %v1120, %v1120
        %v1196 = vpack.c.bf16 %v1154, %v1154
        %v1197 = vpack.c.bf16 %v1156, %v1156
        %v1198 = vpack.c.bf16 %v1190, %v1190
        %v1199 = vpack.c.bf16 %v1192, %v1192
        %v1201 = vsel %vm978, %v1194, 0
        %v1204 = vsel %vm978, %v1196, 0
        %1206 = vmatpush.bf16.xpose.msra.mxu0 0
        %1207 = vmatpush.bf16.xpose.msra.mxu0 0
        %1208 = vmatpush.bf16.xpose.msra.mxu0 0
        %1209 = vmatpush.bf16.xpose.msra.mxu0 0
        %1210 = vmatpush.bf16.xpose.msra.mxu0 0
        %1211 = vmatpush.bf16.xpose.msra.mxu0 0
        %1212 = vmatpush.bf16.xpose.msra.mxu0 0
        %1213 = vmatpush.bf16.xpose.msra.mxu0 %v1204
        %1214 = vmatmul.bf16.gmra.mxu0 %v1201
        %v1215 = vpop.f32.mrf.mxu0
        %v1216 = vadd.f32 0.0, %v1215
        %v1217 = vpop.f32.mrf.mxu0
        %1218 = vdwg.mxu0
        %v1220 = vsel %vm978, %v1195, 0
        %v1223 = vsel %vm978, %v1197, 0
        %1225 = vmatpush.bf16.xpose.msra.mxu0 0
        %1226 = vmatpush.bf16.xpose.msra.mxu0 0
        %1227 = vmatpush.bf16.xpose.msra.mxu0 0
        %1228 = vmatpush.bf16.xpose.msra.mxu0 0
        %1229 = vmatpush.bf16.xpose.msra.mxu0 0
        %1230 = vmatpush.bf16.xpose.msra.mxu0 0
        %1231 = vmatpush.bf16.xpose.msra.mxu0 0
        %1232 = vmatpush.bf16.xpose.msra.mxu0 %v1223
        %1233 = vmatmul.bf16.gmra.mxu0 %v1220
        %v1234 = vpop.f32.mrf.mxu0
        %v1235 = vadd.f32 0.0, %v1234
        %v1236 = vpop.f32.mrf.mxu0
        %1237 = vdwg.mxu0
        %v1238 = vmul.f32 %v1216, 0.35355338
        %v1239 = vmul.f32 %v1235, 0.35355338
        %v1240 = vadd.f32 %v1238, %v866
        %v1241 = vadd.f32 %v1239, %v866
        %v1242 = vsel %vm978, %v1240, -inf
        %1243 = vmax.xlane.f32.xlu0 %v1242
        %v1244 = vpop.xlane.xlu0 %1243
        %v1245 = vsel %vm978, %v1241, -inf
        %1246 = vmax.xlane.f32.xlu0 %v1245
        %v1247 = vpop.xlane.xlu0 %1246
        %v1248 = vsub.f32 %v1240, %v1244
        %v1249 = vsub.f32 %v1241, %v1247
        %v1250 = vmul.f32 %v1248, 1.442695
        %v1251 = vpow.pop %v1250
        %v1252 = vmul.f32 %v1249, 1.442695
        %v1253 = vpow.pop %v1252
        %v1254 = vsel %vm978, %v1251, 0.0
        %1255 = vadd.xlane.f32.xlu0 %v1254
        %v1256 = vpop.xlane.xlu0 %1255
        %v1257 = vsel %vm978, %v1253, 0.0
        %1258 = vadd.xlane.f32.xlu0 %v1257
        %v1259 = vpop.xlane.xlu0 %1258
        %v1260 = vrcp.pop %v1256
        %v1261 = vrcp.pop %v1259
        %v1262 = vmul.f32 %v1251, %v1260
        %v1263 = vmul.f32 %v1253, %v1261
        %v1264 = vpack.c.bf16 %v1262, %v1262
        %v1265 = vpack.c.bf16 %v1263, %v1263
        %v1267 = vsel %vm978, %v1264, 0
        %v1270 = vsel %vm1048, %v1198, 0
        %1272 = vmatpush.bf16.msra.mxu0 0
        %1273 = vmatpush.bf16.msra.mxu0 0
        %1274 = vmatpush.bf16.msra.mxu0 0
        %1275 = vmatpush.bf16.msra.mxu0 0
        %1276 = vmatpush.bf16.msra.mxu0 0
        %1277 = vmatpush.bf16.msra.mxu0 0
        %1278 = vmatpush.bf16.msra.mxu0 0
        %1279 = vmatpush.bf16.msra.mxu0 %v1270
        %1280 = vmatmul.bf16.gmra.mxu0 %v1267
        %v1281 = vpop.f32.mrf.mxu0
        %v1282 = vadd.f32 0.0, %v1281
        %v1283 = vpop.f32.mrf.mxu0
        %1284 = vdwg.mxu0
        %v1286 = vsel %vm978, %v1265, 0
        %v1289 = vsel %vm1048, %v1199, 0
        %1291 = vmatpush.bf16.msra.mxu0 0
        %1292 = vmatpush.bf16.msra.mxu0 0
        %1293 = vmatpush.bf16.msra.mxu0 0
        %1294 = vmatpush.bf16.msra.mxu0 0
        %1295 = vmatpush.bf16.msra.mxu0 0
        %1296 = vmatpush.bf16.msra.mxu0 0
        %1297 = vmatpush.bf16.msra.mxu0 0
        %1298 = vmatpush.bf16.msra.mxu0 %v1289
        %1299 = vmatmul.bf16.gmra.mxu0 %v1286
        %v1300 = vpop.f32.mrf.mxu0
        %v1301 = vadd.f32 0.0, %v1300
        %v1302 = vpop.f32.mrf.mxu0
        %1303 = vdwg.mxu0
        %v1304 = vpack.c.bf16 %v1301, %v1282
        %s1305 = scalar_lea.vmem %s758, 4
        %v1306 = vld [vmem:[%s1305] sm:$0xf]
        %v1308 = vsel %vm978, %v1304, 0
        %v1311 = vsel %vm1048, %v1306, 0
        %1313 = vmatpush.bf16.msra.mxu0 0
        %1314 = vmatpush.bf16.msra.mxu0 0
        %1315 = vmatpush.bf16.msra.mxu0 0
        %1316 = vmatpush.bf16.msra.mxu0 0
        %1317 = vmatpush.bf16.msra.mxu0 0
        %1318 = vmatpush.bf16.msra.mxu0 0
        %1319 = vmatpush.bf16.msra.mxu0 0
        %1320 = vmatpush.bf16.msra.mxu0 %v1311
        %1321 = vmatmul.bf16.gmra.mxu0 %v1308
        %v1322 = vpop.f32.mrf.mxu0
        %v1323 = vadd.f32 0.0, %v1322
        %v1324 = vpop.f32.mrf.mxu0
        %v1325 = vadd.f32 0.0, %v1324
        %1326 = vdwg.mxu0
        %v1328 = vsel %vm978, %v1084, 0
        %v1331 = vsel %vm1048, %v1085, 0
        %1333 = vmatpush.bf16.msra.mxu0 0
        %1334 = vmatpush.bf16.msra.mxu0 0
        %1335 = vmatpush.bf16.msra.mxu0 0
        %1336 = vmatpush.bf16.msra.mxu0 0
        %1337 = vmatpush.bf16.msra.mxu0 0
        %1338 = vmatpush.bf16.msra.mxu0 0
        %1339 = vmatpush.bf16.msra.mxu0 0
        %1340 = vmatpush.bf16.msra.mxu0 %v1331
        %1341 = vmatmul.bf16.gmra.mxu0 %v1328
        %v1342 = vpop.f32.mrf.mxu0
        %v1343 = vadd.f32 %v1323, %v1342
        %v1344 = vpop.f32.mrf.mxu0
        %v1345 = vadd.f32 %v1325, %v1344
        %1346 = vdwg.mxu0
        %s1347 = scalar_lea.vmem %s731, 32
        %v1348 = vld [vmem:[%s1347] sm:$0xf]
        %v1349 = vld [vmem:[%s1347 + $0x4] sm:$0xf]
        %v1350 = vld [vmem:[%s1347 + $0x8] sm:$0xf]
        %v1351 = vld [vmem:[%s1347 + $0xc] sm:$0xf]
        %s1352 = scalar_lea.vmem %s745, 2
        %v1353 = vld [vmem:[%s1352] sm:$0x1]
        %v1355 = vperm.slane %v1353, 0
        %v1361 = vunpack.c.l.b16 %v1348
        %v1362 = vunpack.c.l.b16 %v1349
        %v1363 = vunpack.c.l.b16 %v1350
        %v1364 = vunpack.c.l.b16 %v1351
        %v1365 = vpack.c.b16 %v1362, %v1361
        %v1366 = vpack.c.b16 %v1364, %v1363
        %1369 = vmatpush.bf16.msra.mxu0 0
        %1370 = vmatpush.bf16.msra.mxu0 0
        %1371 = vmatpush.bf16.msra.mxu0 0
        %1372 = vmatpush.bf16.msra.mxu0 0
        %1373 = vmatpush.bf16.msra.mxu0 0
        %1374 = vmatpush.bf16.msra.mxu0 0
        %1375 = vmatpush.bf16.msra.mxu0 %v1366
        %1376 = vmatpush.bf16.msra.mxu0 %v1365
        %1377 = vmatmul.bf16.gmra.mxu0 %v888
        %v1378 = vpop.f32.mrf.mxu0
        %v1379 = vadd.f32 %v1355, %v1378
        %v1380 = vpop.f32.mrf.mxu0
        %v1381 = vadd.f32 %v1355, %v1380
        %1382 = vdwg.mxu0
        %s1383 = scalar_lea.vmem %s736, 32
        %v1384 = vld [vmem:[%s1383] sm:$0xf]
        %v1385 = vld [vmem:[%s1383 + $0x4] sm:$0xf]
        %v1386 = vld [vmem:[%s1383 + $0x8] sm:$0xf]
        %v1387 = vld [vmem:[%s1383 + $0xc] sm:$0xf]
        %s1388 = scalar_lea.vmem %s749, 2
        %v1389 = vld [vmem:[%s1388] sm:$0x1]
        %v1391 = vperm.slane %v1389, 0
        %v1397 = vunpack.c.l.b16 %v1384
        %v1398 = vunpack.c.l.b16 %v1385
        %v1399 = vunpack.c.l.b16 %v1386
        %v1400 = vunpack.c.l.b16 %v1387
        %v1401 = vpack.c.b16 %v1398, %v1397
        %v1402 = vpack.c.b16 %v1400, %v1399
        %1405 = vmatpush.bf16.msra.mxu0 0
        %1406 = vmatpush.bf16.msra.mxu0 0
        %1407 = vmatpush.bf16.msra.mxu0 0
        %1408 = vmatpush.bf16.msra.mxu0 0
        %1409 = vmatpush.bf16.msra.mxu0 0
        %1410 = vmatpush.bf16.msra.mxu0 0
        %1411 = vmatpush.bf16.msra.mxu0 %v1402
        %1412 = vmatpush.bf16.msra.mxu0 %v1401
        %1413 = vmatmul.bf16.gmra.mxu0 %v888
        %v1414 = vpop.f32.mrf.mxu0
        %v1415 = vadd.f32 %v1391, %v1414
        %v1416 = vpop.f32.mrf.mxu0
        %v1417 = vadd.f32 %v1391, %v1416
        %1418 = vdwg.mxu0
        %s1419 = scalar_lea.vmem %s741, 32
        %v1420 = vld [vmem:[%s1419] sm:$0xf]
        %v1421 = vld [vmem:[%s1419 + $0x4] sm:$0xf]
        %v1422 = vld [vmem:[%s1419 + $0x8] sm:$0xf]
        %v1423 = vld [vmem:[%s1419 + $0xc] sm:$0xf]
        %s1424 = scalar_lea.vmem %s753, 2
        %v1425 = vld [vmem:[%s1424] sm:$0x1]
        %v1427 = vperm.slane %v1425, 0
        %v1433 = vunpack.c.l.b16 %v1420
        %v1434 = vunpack.c.l.b16 %v1421
        %v1435 = vunpack.c.l.b16 %v1422
        %v1436 = vunpack.c.l.b16 %v1423
        %v1437 = vpack.c.b16 %v1434, %v1433
        %v1438 = vpack.c.b16 %v1436, %v1435
        %1441 = vmatpush.bf16.msra.mxu0 0
        %1442 = vmatpush.bf16.msra.mxu0 0
        %1443 = vmatpush.bf16.msra.mxu0 0
        %1444 = vmatpush.bf16.msra.mxu0 0
        %1445 = vmatpush.bf16.msra.mxu0 0
        %1446 = vmatpush.bf16.msra.mxu0 0
        %1447 = vmatpush.bf16.msra.mxu0 %v1438
        %1448 = vmatpush.bf16.msra.mxu0 %v1437
        %1449 = vmatmul.bf16.gmra.mxu0 %v888
        %v1450 = vpop.f32.mrf.mxu0
        %v1451 = vadd.f32 %v1427, %v1450
        %v1452 = vpop.f32.mrf.mxu0
        %v1453 = vadd.f32 %v1427, %v1452
        %1454 = vdwg.mxu0
        %v1455 = vpack.c.bf16 %v1379, %v1379
        %v1456 = vpack.c.bf16 %v1381, %v1381
        %v1457 = vpack.c.bf16 %v1415, %v1415
        %v1458 = vpack.c.bf16 %v1417, %v1417
        %v1459 = vpack.c.bf16 %v1451, %v1451
        %v1460 = vpack.c.bf16 %v1453, %v1453
        %v1462 = vsel %vm978, %v1455, 0
        %v1465 = vsel %vm978, %v1457, 0
        %1467 = vmatpush.bf16.xpose.msra.mxu0 0
        %1468 = vmatpush.bf16.xpose.msra.mxu0 0
        %1469 = vmatpush.bf16.xpose.msra.mxu0 0
        %1470 = vmatpush.bf16.xpose.msra.mxu0 0
        %1471 = vmatpush.bf16.xpose.msra.mxu0 0
        %1472 = vmatpush.bf16.xpose.msra.mxu0 0
        %1473 = vmatpush.bf16.xpose.msra.mxu0 0
        %1474 = vmatpush.bf16.xpose.msra.mxu0 %v1465
        %1475 = vmatmul.bf16.gmra.mxu0 %v1462
        %v1476 = vpop.f32.mrf.mxu0
        %v1477 = vadd.f32 0.0, %v1476
        %v1478 = vpop.f32.mrf.mxu0
        %1479 = vdwg.mxu0
        %v1481 = vsel %vm978, %v1456, 0
        %v1484 = vsel %vm978, %v1458, 0
        %1486 = vmatpush.bf16.xpose.msra.mxu0 0
        %1487 = vmatpush.bf16.xpose.msra.mxu0 0
        %1488 = vmatpush.bf16.xpose.msra.mxu0 0
        %1489 = vmatpush.bf16.xpose.msra.mxu0 0
        %1490 = vmatpush.bf16.xpose.msra.mxu0 0
        %1491 = vmatpush.bf16.xpose.msra.mxu0 0
        %1492 = vmatpush.bf16.xpose.msra.mxu0 0
        %1493 = vmatpush.bf16.xpose.msra.mxu0 %v1484
        %1494 = vmatmul.bf16.gmra.mxu0 %v1481
        %v1495 = vpop.f32.mrf.mxu0
        %v1496 = vadd.f32 0.0, %v1495
        %v1497 = vpop.f32.mrf.mxu0
        %1498 = vdwg.mxu0
        %v1499 = vmul.f32 %v1477, 0.35355338
        %v1500 = vmul.f32 %v1496, 0.35355338
        %v1501 = vadd.f32 %v1499, %v866
        %v1502 = vadd.f32 %v1500, %v866
        %v1503 = vsel %vm978, %v1501, -inf
        %1504 = vmax.xlane.f32.xlu0 %v1503
        %v1505 = vpop.xlane.xlu0 %1504
        %v1506 = vsel %vm978, %v1502, -inf
        %1507 = vmax.xlane.f32.xlu0 %v1506
        %v1508 = vpop.xlane.xlu0 %1507
        %v1509 = vsub.f32 %v1501, %v1505
        %v1510 = vsub.f32 %v1502, %v1508
        %v1511 = vmul.f32 %v1509, 1.442695
        %v1512 = vpow.pop %v1511
        %v1513 = vmul.f32 %v1510, 1.442695
        %v1514 = vpow.pop %v1513
        %v1515 = vsel %vm978, %v1512, 0.0
        %1516 = vadd.xlane.f32.xlu0 %v1515
        %v1517 = vpop.xlane.xlu0 %1516
        %v1518 = vsel %vm978, %v1514, 0.0
        %1519 = vadd.xlane.f32.xlu0 %v1518
        %v1520 = vpop.xlane.xlu0 %1519
        %v1521 = vrcp.pop %v1517
        %v1522 = vrcp.pop %v1520
        %v1523 = vmul.f32 %v1512, %v1521
        %v1524 = vmul.f32 %v1514, %v1522
        %v1525 = vpack.c.bf16 %v1523, %v1523
        %v1526 = vpack.c.bf16 %v1524, %v1524
        %v1528 = vsel %vm978, %v1525, 0
        %v1531 = vsel %vm1048, %v1459, 0
        %1533 = vmatpush.bf16.msra.mxu0 0
        %1534 = vmatpush.bf16.msra.mxu0 0
        %1535 = vmatpush.bf16.msra.mxu0 0
        %1536 = vmatpush.bf16.msra.mxu0 0
        %1537 = vmatpush.bf16.msra.mxu0 0
        %1538 = vmatpush.bf16.msra.mxu0 0
        %1539 = vmatpush.bf16.msra.mxu0 0
        %1540 = vmatpush.bf16.msra.mxu0 %v1531
        %1541 = vmatmul.bf16.gmra.mxu0 %v1528
        %v1542 = vpop.f32.mrf.mxu0
        %v1543 = vadd.f32 0.0, %v1542
        %v1544 = vpop.f32.mrf.mxu0
        %1545 = vdwg.mxu0
        %v1547 = vsel %vm978, %v1526, 0
        %v1550 = vsel %vm1048, %v1460, 0
        %1552 = vmatpush.bf16.msra.mxu0 0
        %1553 = vmatpush.bf16.msra.mxu0 0
        %1554 = vmatpush.bf16.msra.mxu0 0
        %1555 = vmatpush.bf16.msra.mxu0 0
        %1556 = vmatpush.bf16.msra.mxu0 0
        %1557 = vmatpush.bf16.msra.mxu0 0
        %1558 = vmatpush.bf16.msra.mxu0 0
        %1559 = vmatpush.bf16.msra.mxu0 %v1550
        %1560 = vmatmul.bf16.gmra.mxu0 %v1547
        %v1561 = vpop.f32.mrf.mxu0
        %v1562 = vadd.f32 0.0, %v1561
        %v1563 = vpop.f32.mrf.mxu0
        %1564 = vdwg.mxu0
        %v1565 = vpack.c.bf16 %v1562, %v1543
        %s1566 = scalar_lea.vmem %s758, 8
        %v1567 = vld [vmem:[%s1566] sm:$0xf]
        %v1569 = vsel %vm978, %v1565, 0
        %v1572 = vsel %vm1048, %v1567, 0
        %1574 = vmatpush.bf16.msra.mxu0 0
        %1575 = vmatpush.bf16.msra.mxu0 0
        %1576 = vmatpush.bf16.msra.mxu0 0
        %1577 = vmatpush.bf16.msra.mxu0 0
        %1578 = vmatpush.bf16.msra.mxu0 0
        %1579 = vmatpush.bf16.msra.mxu0 0
        %1580 = vmatpush.bf16.msra.mxu0 0
        %1581 = vmatpush.bf16.msra.mxu0 %v1572
        %1582 = vmatmul.bf16.gmra.mxu0 %v1569
        %v1583 = vpop.f32.mrf.mxu0
        %v1584 = vadd.f32 0.0, %v1583
        %v1585 = vpop.f32.mrf.mxu0
        %v1586 = vadd.f32 0.0, %v1585
        %1587 = vdwg.mxu0
        %v1588 = vadd.f32 %v1343, %v1584
        %v1589 = vadd.f32 %v1345, %v1586
        %s1590 = scalar_lea.vmem %s731, 48
        %v1591 = vld [vmem:[%s1590] sm:$0xf]
        %v1592 = vld [vmem:[%s1590 + $0x4] sm:$0xf]
        %v1593 = vld [vmem:[%s1590 + $0x8] sm:$0xf]
        %v1594 = vld [vmem:[%s1590 + $0xc] sm:$0xf]
        %s1595 = scalar_lea.vmem %s745, 3
        %v1596 = vld [vmem:[%s1595] sm:$0x1]
        %v1598 = vperm.slane %v1596, 0
        %v1604 = vunpack.c.l.b16 %v1591
        %v1605 = vunpack.c.l.b16 %v1592
        %v1606 = vunpack.c.l.b16 %v1593
        %v1607 = vunpack.c.l.b16 %v1594
        %v1608 = vpack.c.b16 %v1605, %v1604
        %v1609 = vpack.c.b16 %v1607, %v1606
        %1612 = vmatpush.bf16.msra.mxu0 0
        %1613 = vmatpush.bf16.msra.mxu0 0
        %1614 = vmatpush.bf16.msra.mxu0 0
        %1615 = vmatpush.bf16.msra.mxu0 0
        %1616 = vmatpush.bf16.msra.mxu0 0
        %1617 = vmatpush.bf16.msra.mxu0 0
        %1618 = vmatpush.bf16.msra.mxu0 %v1609
        %1619 = vmatpush.bf16.msra.mxu0 %v1608
        %1620 = vmatmul.bf16.gmra.mxu0 %v888
        %v1621 = vpop.f32.mrf.mxu0
        %v1622 = vadd.f32 %v1598, %v1621
        %v1623 = vpop.f32.mrf.mxu0
        %v1624 = vadd.f32 %v1598, %v1623
        %1625 = vdwg.mxu0
        %s1626 = scalar_lea.vmem %s736, 48
        %v1627 = vld [vmem:[%s1626] sm:$0xf]
        %v1628 = vld [vmem:[%s1626 + $0x4] sm:$0xf]
        %v1629 = vld [vmem:[%s1626 + $0x8] sm:$0xf]
        %v1630 = vld [vmem:[%s1626 + $0xc] sm:$0xf]
        %s1631 = scalar_lea.vmem %s749, 3
        %v1632 = vld [vmem:[%s1631] sm:$0x1]
        %v1634 = vperm.slane %v1632, 0
        %v1640 = vunpack.c.l.b16 %v1627
        %v1641 = vunpack.c.l.b16 %v1628
        %v1642 = vunpack.c.l.b16 %v1629
        %v1643 = vunpack.c.l.b16 %v1630
        %v1644 = vpack.c.b16 %v1641, %v1640
        %v1645 = vpack.c.b16 %v1643, %v1642
        %1648 = vmatpush.bf16.msra.mxu0 0
        %1649 = vmatpush.bf16.msra.mxu0 0
        %1650 = vmatpush.bf16.msra.mxu0 0
        %1651 = vmatpush.bf16.msra.mxu0 0
        %1652 = vmatpush.bf16.msra.mxu0 0
        %1653 = vmatpush.bf16.msra.mxu0 0
        %1654 = vmatpush.bf16.msra.mxu0 %v1645
        %1655 = vmatpush.bf16.msra.mxu0 %v1644
        %1656 = vmatmul.bf16.gmra.mxu0 %v888
        %v1657 = vpop.f32.mrf.mxu0
        %v1658 = vadd.f32 %v1634, %v1657
        %v1659 = vpop.f32.mrf.mxu0
        %v1660 = vadd.f32 %v1634, %v1659
        %1661 = vdwg.mxu0
        %s1662 = scalar_lea.vmem %s741, 48
        %v1663 = vld [vmem:[%s1662] sm:$0xf]
        %v1664 = vld [vmem:[%s1662 + $0x4] sm:$0xf]
        %v1665 = vld [vmem:[%s1662 + $0x8] sm:$0xf]
        %v1666 = vld [vmem:[%s1662 + $0xc] sm:$0xf]
        %s1667 = scalar_lea.vmem %s753, 3
        %v1668 = vld [vmem:[%s1667] sm:$0x1]
        %v1670 = vperm.slane %v1668, 0
        %v1676 = vunpack.c.l.b16 %v1663
        %v1677 = vunpack.c.l.b16 %v1664
        %v1678 = vunpack.c.l.b16 %v1665
        %v1679 = vunpack.c.l.b16 %v1666
        %v1680 = vpack.c.b16 %v1677, %v1676
        %v1681 = vpack.c.b16 %v1679, %v1678
        %1684 = vmatpush.bf16.msra.mxu0 0
        %1685 = vmatpush.bf16.msra.mxu0 0
        %1686 = vmatpush.bf16.msra.mxu0 0
        %1687 = vmatpush.bf16.msra.mxu0 0
        %1688 = vmatpush.bf16.msra.mxu0 0
        %1689 = vmatpush.bf16.msra.mxu0 0
        %1690 = vmatpush.bf16.msra.mxu0 %v1681
        %1691 = vmatpush.bf16.msra.mxu0 %v1680
        %1692 = vmatmul.bf16.gmra.mxu0 %v888
        %v1693 = vpop.f32.mrf.mxu0
        %v1694 = vadd.f32 %v1670, %v1693
        %v1695 = vpop.f32.mrf.mxu0
        %v1696 = vadd.f32 %v1670, %v1695
        %1697 = vdwg.mxu0
        %v1698 = vpack.c.bf16 %v1622, %v1622
        %v1699 = vpack.c.bf16 %v1624, %v1624
        %v1700 = vpack.c.bf16 %v1658, %v1658
        %v1701 = vpack.c.bf16 %v1660, %v1660
        %v1702 = vpack.c.bf16 %v1694, %v1694
        %v1703 = vpack.c.bf16 %v1696, %v1696
        %v1705 = vsel %vm978, %v1698, 0
        %v1708 = vsel %vm978, %v1700, 0
        %1710 = vmatpush.bf16.xpose.msra.mxu0 0
        %1711 = vmatpush.bf16.xpose.msra.mxu0 0
        %1712 = vmatpush.bf16.xpose.msra.mxu0 0
        %1713 = vmatpush.bf16.xpose.msra.mxu0 0
        %1714 = vmatpush.bf16.xpose.msra.mxu0 0
        %1715 = vmatpush.bf16.xpose.msra.mxu0 0
        %1716 = vmatpush.bf16.xpose.msra.mxu0 0
        %1717 = vmatpush.bf16.xpose.msra.mxu0 %v1708
        %1718 = vmatmul.bf16.gmra.mxu0 %v1705
        %v1719 = vpop.f32.mrf.mxu0
        %v1720 = vadd.f32 0.0, %v1719
        %v1721 = vpop.f32.mrf.mxu0
        %1722 = vdwg.mxu0
        %v1724 = vsel %vm978, %v1699, 0
        %v1727 = vsel %vm978, %v1701, 0
        %1729 = vmatpush.bf16.xpose.msra.mxu0 0
        %1730 = vmatpush.bf16.xpose.msra.mxu0 0
        %1731 = vmatpush.bf16.xpose.msra.mxu0 0
        %1732 = vmatpush.bf16.xpose.msra.mxu0 0
        %1733 = vmatpush.bf16.xpose.msra.mxu0 0
        %1734 = vmatpush.bf16.xpose.msra.mxu0 0
        %1735 = vmatpush.bf16.xpose.msra.mxu0 0
        %1736 = vmatpush.bf16.xpose.msra.mxu0 %v1727
        %1737 = vmatmul.bf16.gmra.mxu0 %v1724
        %v1738 = vpop.f32.mrf.mxu0
        %v1739 = vadd.f32 0.0, %v1738
        %v1740 = vpop.f32.mrf.mxu0
        %1741 = vdwg.mxu0
        %v1742 = vmul.f32 %v1720, 0.35355338
        %v1743 = vmul.f32 %v1739, 0.35355338
        %v1744 = vadd.f32 %v1742, %v866
        %v1745 = vadd.f32 %v1743, %v866
        %v1746 = vsel %vm978, %v1744, -inf
        %1747 = vmax.xlane.f32.xlu0 %v1746
        %v1748 = vpop.xlane.xlu0 %1747
        %v1749 = vsel %vm978, %v1745, -inf
        %1750 = vmax.xlane.f32.xlu0 %v1749
        %v1751 = vpop.xlane.xlu0 %1750
        %v1752 = vsub.f32 %v1744, %v1748
        %v1753 = vsub.f32 %v1745, %v1751
        %v1754 = vmul.f32 %v1752, 1.442695
        %v1755 = vpow.pop %v1754
        %v1756 = vmul.f32 %v1753, 1.442695
        %v1757 = vpow.pop %v1756
        %v1758 = vsel %vm978, %v1755, 0.0
        %1759 = vadd.xlane.f32.xlu0 %v1758
        %v1760 = vpop.xlane.xlu0 %1759
        %v1761 = vsel %vm978, %v1757, 0.0
        %1762 = vadd.xlane.f32.xlu0 %v1761
        %v1763 = vpop.xlane.xlu0 %1762
        %v1764 = vrcp.pop %v1760
        %v1765 = vrcp.pop %v1763
        %v1766 = vmul.f32 %v1755, %v1764
        %v1767 = vmul.f32 %v1757, %v1765
        %v1768 = vpack.c.bf16 %v1766, %v1766
        %v1769 = vpack.c.bf16 %v1767, %v1767
        %v1771 = vsel %vm978, %v1768, 0
        %v1774 = vsel %vm1048, %v1702, 0
        %1776 = vmatpush.bf16.msra.mxu0 0
        %1777 = vmatpush.bf16.msra.mxu0 0
        %1778 = vmatpush.bf16.msra.mxu0 0
        %1779 = vmatpush.bf16.msra.mxu0 0
        %1780 = vmatpush.bf16.msra.mxu0 0
        %1781 = vmatpush.bf16.msra.mxu0 0
        %1782 = vmatpush.bf16.msra.mxu0 0
        %1783 = vmatpush.bf16.msra.mxu0 %v1774
        %1784 = vmatmul.bf16.gmra.mxu0 %v1771
        %v1785 = vpop.f32.mrf.mxu0
        %v1786 = vadd.f32 0.0, %v1785
        %v1787 = vpop.f32.mrf.mxu0
        %1788 = vdwg.mxu0
        %v1790 = vsel %vm978, %v1769, 0
        %v1793 = vsel %vm1048, %v1703, 0
        %1795 = vmatpush.bf16.msra.mxu0 0
        %1796 = vmatpush.bf16.msra.mxu0 0
        %1797 = vmatpush.bf16.msra.mxu0 0
        %1798 = vmatpush.bf16.msra.mxu0 0
        %1799 = vmatpush.bf16.msra.mxu0 0
        %1800 = vmatpush.bf16.msra.mxu0 0
        %1801 = vmatpush.bf16.msra.mxu0 0
        %1802 = vmatpush.bf16.msra.mxu0 %v1793
        %1803 = vmatmul.bf16.gmra.mxu0 %v1790
        %v1804 = vpop.f32.mrf.mxu0
        %v1805 = vadd.f32 0.0, %v1804
        %v1806 = vpop.f32.mrf.mxu0
        %1807 = vdwg.mxu0
        %v1808 = vpack.c.bf16 %v1805, %v1786
        %s1809 = scalar_lea.vmem %s758, 12
        %v1810 = vld [vmem:[%s1809] sm:$0xf]
        %v1812 = vsel %vm978, %v1808, 0
        %v1815 = vsel %vm1048, %v1810, 0
        %1817 = vmatpush.bf16.msra.mxu0 0
        %1818 = vmatpush.bf16.msra.mxu0 0
        %1819 = vmatpush.bf16.msra.mxu0 0
        %1820 = vmatpush.bf16.msra.mxu0 0
        %1821 = vmatpush.bf16.msra.mxu0 0
        %1822 = vmatpush.bf16.msra.mxu0 0
        %1823 = vmatpush.bf16.msra.mxu0 0
        %1824 = vmatpush.bf16.msra.mxu0 %v1815
        %1825 = vmatmul.bf16.gmra.mxu0 %v1812
        %v1826 = vpop.f32.mrf.mxu0
        %v1827 = vadd.f32 0.0, %v1826
        %v1828 = vpop.f32.mrf.mxu0
        %v1829 = vadd.f32 0.0, %v1828
        %1830 = vdwg.mxu0
        %v1831 = vadd.f32 %v1588, %v1827
        %v1832 = vadd.f32 %v1589, %v1829
        %v1833 = vadd.f32 %v794, %v1831
        %v1834 = vadd.f32 %v795, %v1832
        %v1835 = vld [vmem:[%s761] sm:$0x1]
        %v1837 = vperm.slane %v1835, 0
        %v1839 = vadd.f32 %v1833, %v1837
        %v1840 = vadd.f32 %v1834, %v1837
        %v1841 = vld [vmem:[%s764] sm:$0x1]
        %v1842 = vld [vmem:[%s767] sm:$0x1]
        %v1843 = vsel %vm798, %v1839, 0.0
        %1844 = vadd.xlane.f32.xlu0 %v1843
        %v1845 = vpop.xlane.xlu0 %1844
        %v1846 = vsel %vm798, %v1840, 0.0
        %1847 = vadd.xlane.f32.xlu0 %v1846
        %v1848 = vpop.xlane.xlu0 %1847
        %v1849 = vmul.f32 %v1845, %v811
        %v1850 = vmul.f32 %v1848, %v811
        %v1851 = vsub.f32 %v1839, %v1849
        %v1852 = vsub.f32 %v1840, %v1850
        %v1853 = vmul.f32 %v1851, %v1851
        %v1854 = vmul.f32 %v1852, %v1852
        %v1855 = vsel %vm798, %v1853, 0.0
        %1856 = vadd.xlane.f32.xlu0 %v1855
        %v1857 = vpop.xlane.xlu0 %1856
        %v1858 = vsel %vm798, %v1854, 0.0
        %1859 = vadd.xlane.f32.xlu0 %v1858
        %v1860 = vpop.xlane.xlu0 %1859
        %v1861 = vmul.f32 %v1857, %v811
        %v1862 = vmul.f32 %v1860, %v811
        %v1863 = vadd.f32 %v1861, 1e-05
        %v1864 = vadd.f32 %v1862, 1e-05
        %v1865 = vrsqrt.pop %v1863
        %v1866 = vmul.f32 %v1865, %v1863
        %v1867 = vmul.f32 %v1866, %v1865
        %v1868 = vmul.f32 0.5, %v1867
        %v1869 = vsub.f32 1.5, %v1868
        %v1870 = vmul.f32 %v1865, %v1869
        %vm1871 = vweird.f32 %v1863
        %vm1872 = vweird.f32 %v1865
        %vm1873 = vmor %vm1871, %vm1872
        %v1874 = vsel %vm1873, %v1865, %v1870
        %v1875 = vrsqrt.pop %v1864
        %v1876 = vmul.f32 %v1875, %v1864
        %v1877 = vmul.f32 %v1876, %v1875
        %v1878 = vmul.f32 0.5, %v1877
        %v1879 = vsub.f32 1.5, %v1878
        %v1880 = vmul.f32 %v1875, %v1879
        %vm1881 = vweird.f32 %v1864
        %vm1882 = vweird.f32 %v1875
        %vm1883 = vmor %vm1881, %vm1882
        %v1884 = vsel %vm1883, %v1875, %v1880
        %v1885 = vmul.f32 %v1851, %v1874
        %v1886 = vmul.f32 %v1852, %v1884
        %v1888 = vperm.slane %v1841, 0
        %v1890 = vmul.f32 %v1885, %v1888
        %v1891 = vmul.f32 %v1886, %v1888
        %v1893 = vperm.slane %v1842, 0
        %v1895 = vadd.f32 %v1890, %v1893
        %v1896 = vadd.f32 %v1891, %v1893
        %v1897 = vpack.c.bf16 %v1896, %v1895
        %v1898 = vld [vmem:[%s772] sm:$0xf]
        %v1899 = vld [vmem:[%s772 + $0x4] sm:$0xf]
        %v1900 = vld [vmem:[%s772 + $0x8] sm:$0xf]
        %v1901 = vld [vmem:[%s772 + $0xc] sm:$0xf]
        %v1902 = vld [vmem:[%s775] sm:$0x1]
        %v1904 = vperm.slane %v1902, 0
        %v1910 = vunpack.c.l.b16 %v1898
        %v1911 = vunpack.c.l.b16 %v1899
        %v1912 = vunpack.c.l.b16 %v1900
        %v1913 = vunpack.c.l.b16 %v1901
        %v1914 = vpack.c.b16 %v1911, %v1910
        %v1915 = vpack.c.b16 %v1913, %v1912
        %v1919 = vsel %vm798, %v1897, 0
        %1921 = vmatpush.bf16.msra.mxu0 0
        %1922 = vmatpush.bf16.msra.mxu0 0
        %1923 = vmatpush.bf16.msra.mxu0 0
        %1924 = vmatpush.bf16.msra.mxu0 0
        %1925 = vmatpush.bf16.msra.mxu0 0
        %1926 = vmatpush.bf16.msra.mxu0 0
        %1927 = vmatpush.bf16.msra.mxu0 %v1915
        %1928 = vmatpush.bf16.msra.mxu0 %v1914
        %1929 = vmatmul.bf16.gmra.mxu0 %v1919
        %v1930 = vpop.f32.mrf.mxu0
        %v1931 = vadd.f32 %v1904, %v1930
        %v1932 = vpop.f32.mrf.mxu0
        %v1933 = vadd.f32 %v1904, %v1932
        %1934 = vdwg.mxu0
        %v1935 = vmul.f32 %v1931, 0.5
        %v1936 = vmul.f32 %v1933, 0.5
        %v1937 = vmul.f32 %v1931, 0.044715
        %v1938 = vmul.f32 %v1933, 0.044715
        %v1939 = vmul.f32 %v1937, %v1931
        %v1940 = vmul.f32 %v1938, %v1933
        %v1941 = vmul.f32 %v1939, %v1931
        %v1942 = vmul.f32 %v1940, %v1933
        %v1943 = vadd.f32 %v1931, %v1941
        %v1944 = vadd.f32 %v1933, %v1942
        %v1945 = vmul.f32 %v1943, 0.7978846
        %v1946 = vmul.f32 %v1944, 0.7978846
        %v1947 = vtanh.pop %v1945
        %v1948 = vtanh.pop %v1946
        %v1949 = vadd.f32 %v1947, 1.0
        %v1950 = vadd.f32 %v1948, 1.0
        %v1951 = vmul.f32 %v1935, %v1949
        %v1952 = vmul.f32 %v1936, %v1950
        %v1953 = vpack.c.bf16 %v1952, %v1951
        %v1954 = vld [vmem:[%s780] sm:$0xf]
        %v1955 = vld [vmem:[%s780 + $0x4] sm:$0xf]
        %v1956 = vld [vmem:[%s780 + $0x8] sm:$0xf]
        %v1957 = vld [vmem:[%s780 + $0xc] sm:$0xf]
        %v1958 = vld [vmem:[%s780 + $0x10] sm:$0xf]
        %v1959 = vld [vmem:[%s780 + $0x14] sm:$0xf]
        %v1960 = vld [vmem:[%s780 + $0x18] sm:$0xf]
        %v1961 = vld [vmem:[%s780 + $0x1c] sm:$0xf]
        %v1962 = vld [vmem:[%s780 + $0x20] sm:$0xf]
        %v1963 = vld [vmem:[%s780 + $0x24] sm:$0xf]
        %v1964 = vld [vmem:[%s780 + $0x28] sm:$0xf]
        %v1965 = vld [vmem:[%s780 + $0x2c] sm:$0xf]
        %v1966 = vld [vmem:[%s780 + $0x30] sm:$0xf]
        %v1967 = vld [vmem:[%s780 + $0x34] sm:$0xf]
        %v1968 = vld [vmem:[%s780 + $0x38] sm:$0xf]
        %v1969 = vld [vmem:[%s780 + $0x3c] sm:$0xf]
        %v1970 = vld [vmem:[%s783] sm:$0x1]
        %v1972 = vperm.slane %v1970, 0
        %v1990 = vunpack.c.l.b16 %v1954
        %v1991 = vunpack.c.l.b16 %v1955
        %v1992 = vunpack.c.l.b16 %v1956
        %v1993 = vunpack.c.l.b16 %v1957
        %v1994 = vunpack.c.l.b16 %v1958
        %v1995 = vunpack.c.l.b16 %v1959
        %v1996 = vunpack.c.l.b16 %v1960
        %v1997 = vunpack.c.l.b16 %v1961
        %v1998 = vunpack.c.l.b16 %v1962
        %v1999 = vunpack.c.l.b16 %v1963
        %v2000 = vunpack.c.l.b16 %v1964
        %v2001 = vunpack.c.l.b16 %v1965
        %v2002 = vunpack.c.l.b16 %v1966
        %v2003 = vunpack.c.l.b16 %v1967
        %v2004 = vunpack.c.l.b16 %v1968
        %v2005 = vunpack.c.l.b16 %v1969
        %v2006 = vpack.c.b16 %v1991, %v1990
        %v2007 = vpack.c.b16 %v1993, %v1992
        %v2008 = vpack.c.b16 %v1995, %v1994
        %v2009 = vpack.c.b16 %v1997, %v1996
        %v2010 = vpack.c.b16 %v1999, %v1998
        %v2011 = vpack.c.b16 %v2001, %v2000
        %v2012 = vpack.c.b16 %v2003, %v2002
        %v2013 = vpack.c.b16 %v2005, %v2004
        %2022 = vmatpush.bf16.msra.mxu0 %v2013
        %2023 = vmatpush.bf16.msra.mxu0 %v2012
        %2024 = vmatpush.bf16.msra.mxu0 %v2011
        %2025 = vmatpush.bf16.msra.mxu0 %v2010
        %2026 = vmatpush.bf16.msra.mxu0 %v2009
        %2027 = vmatpush.bf16.msra.mxu0 %v2008
        %2028 = vmatpush.bf16.msra.mxu0 %v2007
        %2029 = vmatpush.bf16.msra.mxu0 %v2006
        %2030 = vmatmul.bf16.gmra.mxu0 %v1953
        %v2031 = vpop.f32.mrf.mxu0
        %v2032 = vadd.f32 %v1972, %v2031
        %v2033 = vpop.f32.mrf.mxu0
        %v2034 = vadd.f32 %v1972, %v2033
        %2035 = vdwg.mxu0
        %v2036 = vadd.f32 %v1839, %v2032
        %v2037 = vadd.f32 %v1840, %v2034
        %2038 = vst.msk [vmem:[#allocation2] sm:$0xff] %vm798, %v2036
        %2039 = vst.msk [vmem:[#allocation2 + $0x8] sm:$0xff] %vm798, %v2037
        // Predicated region
        $region93: #{tpu_custom_call.1} parent=87 // pred_check
          %p2040 = pneg %p479
        $region94: #{tpu_custom_call.1} parent=87 // pred_check_branch
          %2042 = sbr.rel (%p2040) target = $region96
        $region95: #{tpu_custom_call.1} parent=87 // pred_region
          %2044 = vsyncadd [#allocation3], 0
          %s2045 = sshll.u32 [#allocation2], 4
          %s2046 = int_to_ptr.vmem [resolvable:$true] %s2045
          %s2047 = sshll.u32 %s17, 4
          %s2048 = int_to_ptr.hbm [resolvable:$true] %s2047
          %2053 = dma.vmem_to_hbm [thread:$0]  %s2046, 256, %s2048, [#allocation3], 128, 128, 8
        $region96: #{tpu_custom_call.1} parent=87 // pred_fallthru
          _
        // Predicated region
        $region97: #{tpu_custom_call.1} parent=87 // pred_check
          %p2054 = pneg %p479
        $region98: #{tpu_custom_call.1} parent=87 // pred_check_branch
          %2056 = sbr.rel (%p2054) target = $region100
        $region99: #{tpu_custom_call.1} parent=87 // pred_region
          %2058 = dma.done [#allocation3], 256
        $region100: #{tpu_custom_call.1} parent=87 // pred_fallthru
          _
      $region88: #{tpu_custom_call.1} parent=5 // pred_fallthru
        _
      %p2059 = scmp.le.s32.totalorder 2, %s24
      // Predicated region
      $region101: #{tpu_custom_call.1} parent=5 // pred_check
        %p2060 = pneg %p2059
      $region102: #{tpu_custom_call.1} parent=5 // pred_check_branch
        %2062 = sbr.rel (%p2060) target = $region104
      $region103: #{tpu_custom_call.1} parent=5 // pred_region
        %s2063 = ssub.s32 %s24, 2
      $region104: #{tpu_custom_call.1} parent=5 // pred_fallthru
        _
    $region6: #{tpu_custom_call.1} parent=1 // loop_footer
      %s28 = sadd.s32 1, %s24
    $region7: #{tpu_custom_call.1} parent=1 // loop_footer_branch
      %23 = sbr.rel target = $region3
    $region8: #{tpu_custom_call.1} parent=1 // loop_exit
      _
    %2064 = vsyncpa [#allocation3], 1
    %s2065 = scalar_lea.sflag [#allocation3], 1
    %2066 = vsyncpa %s2065, 1

</llo_original>
